<compile_context>
chip_gen: v7x
topology: tpu7x:2x2x1
jax: 0.10.0
libtpu: 0.0.40
codegen_flags: <defaults>
</compile_context>

<pallas_src>
import functools
import math

import jax
import jax.numpy as jnp
from jax import lax
from jax.experimental import pallas as pl
from jax.experimental.pallas import tpu as pltpu


def _sdpa_kernel(q_ref, k_ref, v_ref,
                 wq_ref, bq_ref, wk_ref, bk_ref, wv_ref, bv_ref,
                 wo_ref, bo_ref,
                 out_ref, att_ref,
                 qp_s, kp_s, vp_s, o_s,
                 *, h, d_k, d_v, scale):
    # Batch dim is squeezed out of the BlockSpecs: q/k/v/out refs are 2-D
    # (rows, features); att_ref is (h, tq, nk).

    # Q/K/V projections: one full-width MXU matmul each, f32 accumulate.
    # The 1/sqrt(d_k) scale is folded into the Q projection once.
    qp_s[...] = (jnp.dot(q_ref[...], wq_ref[...],
                         preferred_element_type=jnp.float32)
                 + bq_ref[...]) * scale                              # (tq, h*d_k)
    kp_s[...] = jnp.dot(k_ref[...], wk_ref[...],
                        preferred_element_type=jnp.float32) + bk_ref[...]  # (nk, h*d_k)
    vp_s[...] = jnp.dot(v_ref[...], wv_ref[...],
                        preferred_element_type=jnp.float32) + bv_ref[...]  # (nk, h*d_v)

    # Per-head attention. Heads are contiguous d_k / d_v chunks of the
    # projected features; static slices of the scratch refs are free views,
    # so only one head's worth of vregs is live per iteration.
    for hh in range(h):
        qh = qp_s[:, hh * d_k:(hh + 1) * d_k]        # (tq, d_k)
        kh = kp_s[:, hh * d_k:(hh + 1) * d_k]        # (nk, d_k)
        vh = vp_s[:, hh * d_v:(hh + 1) * d_v]        # (nk, d_v)

        # Contract the last dims directly: no kh.T, no XLU transpose.
        logits = lax.dot_general(qh, kh, (((1,), (1,)), ((), ())),
                                 preferred_element_type=jnp.float32)  # (tq, nk)
        att_h = jax.nn.softmax(logits, axis=-1)      # f32 softmax (v5e EUP/VPU)
        att_ref[hh] = att_h.astype(att_ref.dtype)

        # Stash per-head output into the (tq, h*d_v) slab.
        o_s[:, hh * d_v:(hh + 1) * d_v] = jnp.dot(
            att_h, vh, preferred_element_type=jnp.float32)            # (tq, d_v)

    # Single full-width output projection: (tq, h*d_v) @ (h*d_v, d_model).
    out_ref[...] = (jnp.dot(o_s[...], wo_ref[...],
                            preferred_element_type=jnp.float32)
                    + bo_ref[...]).astype(out_ref.dtype)


def _pick_tq(nq, nk, d_model, h, d_k, d_v, in_bytes, att_bytes,
             budget_bytes=40 * 1024 * 1024):
    """Pick the largest q-tile whose per-step VMEM footprint fits the budget
    (sized for v7x's 64 MiB VMEM; also fine on v5e/v6e's 128 MiB)."""
    # Resident weights/biases (double-buffer pessimistically) + K/V blocks
    # + K/V projection scratch (f32).
    fixed = 2 * (2 * d_model * h * d_k + 2 * d_model * h * d_v) * in_bytes
    fixed += 2 * 2 * nk * d_model * in_bytes
    fixed += 4 * (nk * h * d_k + nk * h * d_v)

    def cost(tq):
        var = 2 * tq * d_model * in_bytes            # q block (double-buffered)
        var += 2 * tq * d_model * in_bytes           # out block
        var += 2 * h * tq * nk * att_bytes           # att block
        var += 4 * tq * (h * d_k + h * d_v)          # qp / o scratch (f32)
        return fixed + var

    divisors = [t for t in (512, 256, 128, 64, 32, 16, 8) if nq % t == 0]
    for tq in divisors:
        if cost(tq) <= budget_bytes:
            return tq, cost(tq)
    tq = divisors[-1] if divisors else nq
    return tq, cost(tq)


def scaled_dot_product_attention(queries, keys, values, params, *, h, d_k, d_v,
                                 att_dtype=None):
    """params: dict of pre-transposed weights (in, out) and (1, out) biases.

    Pass bf16 queries/keys/values/params for bf16 MXU operands (f32 accumulate
    is kept inside the kernel); att is emitted in `att_dtype`
    (default: queries.dtype) to keep its HBM writeback cheap.
    """
    b_s, nq, d_model = queries.shape
    nk = keys.shape[1]
    att_dtype = att_dtype or queries.dtype

    in_bytes = jnp.dtype(queries.dtype).itemsize
    att_bytes = jnp.dtype(att_dtype).itemsize
    tq, vmem_est = _pick_tq(nq, nk, d_model, h, d_k, d_v, in_bytes, att_bytes)

    kernel = functools.partial(_sdpa_kernel, h=h, d_k=d_k, d_v=d_v,
                               scale=1.0 / math.sqrt(d_k))

    def resident(arr):
        # Constant block index across the whole grid -> weights stay pinned in
        # VMEM (no per-step re-DMA).
        n = arr.ndim
        return pl.BlockSpec(arr.shape, lambda b, qi, _n=n: (0,) * _n)

    grid_spec = pltpu.PrefetchScalarGridSpec(
        num_scalar_prefetch=0,
        grid=(b_s, nq // tq),
        in_specs=[
            pl.BlockSpec((None, tq, d_model), lambda b, qi: (b, qi, 0)),  # queries
            pl.BlockSpec((None, nk, d_model), lambda b, qi: (b, 0, 0)),   # keys
            pl.BlockSpec((None, nk, d_model), lambda b, qi: (b, 0, 0)),   # values
            resident(params["wq"]), resident(params["bq"]),
            resident(params["wk"]), resident(params["bk"]),
            resident(params["wv"]), resident(params["bv"]),
            resident(params["wo"]), resident(params["bo"]),
        ],
        out_specs=[
            pl.BlockSpec((None, tq, d_model), lambda b, qi: (b, qi, 0)),   # out
            pl.BlockSpec((None, h, tq, nk), lambda b, qi: (b, 0, qi, 0)),  # att
        ],
        scratch_shapes=[
            pltpu.VMEM((tq, h * d_k), jnp.float32),   # qp (pre-scaled)
            pltpu.VMEM((nk, h * d_k), jnp.float32),   # kp
            pltpu.VMEM((nk, h * d_v), jnp.float32),   # vp
            pltpu.VMEM((tq, h * d_v), jnp.float32),   # per-head output slab
        ],
    )

    # Explicit scoped-VMEM limit: enough for the tile budget, but capped below
    # v7x's 64 MiB physical VMEM.
    vmem_limit = int(min(max(vmem_est + (8 << 20), 32 << 20), 48 << 20))

    out, att = pl.pallas_call(
        kernel,
        grid_spec=grid_spec,
        out_shape=(
            jax.ShapeDtypeStruct((b_s, nq, d_model), queries.dtype),
            jax.ShapeDtypeStruct((b_s, h, nq, nk), att_dtype),
        ),
        compiler_params=pltpu.CompilerParams(
            dimension_semantics=("parallel", "parallel"),
            vmem_limit_bytes=vmem_limit),
    )(queries, keys, values,
      params["wq"], params["bq"], params["wk"], params["bk"],
      params["wv"], params["bv"], params["wo"], params["bo"])
    return out, att


def init_params(key, d_model, d_k, d_v, h):
    """Matches PyTorch init: Linear weight ~ N(0, 0.001), bias = 0.
    Weights stored pre-transposed as (in_features, out_features)."""
    ks = jax.random.split(key, 4)
    std = 0.001
    mk = lambda k, fin, fout: (jax.random.normal(k, (fin, fout), jnp.float32) * std)
    return {
        "wq": mk(ks[0], d_model, h * d_k), "bq": jnp.zeros((1, h * d_k), jnp.float32),
        "wk": mk(ks[1], d_model, h * d_k), "bk": jnp.zeros((1, h * d_k), jnp.float32),
        "wv": mk(ks[2], d_model, h * d_v), "bv": jnp.zeros((1, h * d_v), jnp.float32),
        "wo": mk(ks[3], h * d_v, d_model), "bo": jnp.zeros((1, d_model), jnp.float32),
    }


def reference(queries, keys, values, params, *, h, d_k, d_v):
    """Plain-JAX mirror of the PyTorch forward (eval mode)."""
    b_s, nq, d_model = queries.shape
    nk = keys.shape[1]
    q = (queries @ params["wq"] + params["bq"]).reshape(b_s, nq, h, d_k).transpose(0, 2, 1, 3)
    k = (keys @ params["wk"] + params["bk"]).reshape(b_s, nk, h, d_k).transpose(0, 2, 3, 1)
    v = (values @ params["wv"] + params["bv"]).reshape(b_s, nk, h, d_v).transpose(0, 2, 1, 3)
    att = jnp.einsum("bhqd,bhdk->bhqk", q, k) / math.sqrt(d_k)
    att = jax.nn.softmax(att, axis=-1)
    out = jnp.einsum("bhqk,bhkv->bhqv", att, v).transpose(0, 2, 1, 3).reshape(b_s, nq, h * d_v)
    out = out @ params["wo"] + params["bo"]
    return out, att


if __name__ == "__main__":
    b_s, nq, nk = 2, 8, 8
    d_model, d_k, d_v, h = 32, 16, 16, 4

    key = jax.random.PRNGKey(0)
    kq, kk, kv, kp = jax.random.split(key, 4)
    queries = jax.random.normal(kq, (b_s, nq, d_model), jnp.float32)
    keys = jax.random.normal(kk, (b_s, nk, d_model), jnp.float32)
    values = jax.random.normal(kv, (b_s, nk, d_model), jnp.float32)
    params = init_params(kp, d_model, d_k, d_v, h)

    out, att = scaled_dot_product_attention(queries, keys, values, params,
                                            h=h, d_k=d_k, d_v=d_v)
    out = jax.block_until_ready(out)
    att = jax.block_until_ready(att)

    out_ref, att_ref = reference(queries, keys, values, params, h=h, d_k=d_k, d_v=d_v)
    assert out.shape == (b_s, nq, d_model) and att.shape == (b_s, h, nq, nk)
    assert jnp.allclose(out, out_ref, atol=1e-5, rtol=1e-5)
    assert jnp.allclose(att, att_ref, atol=1e-5, rtol=1e-5)

    print("KERNEL_OK")
</pallas_src>

<mosaic_0001>
module attributes {stable_mosaic.version = 11 : i64} {
  func.func @_sdpa_kernel(%arg0: i32, %arg1: i32, %arg2: memref<1x8x32xf32, #tpu.memory_space<vmem>>, %arg3: memref<1x8x32xf32, #tpu.memory_space<vmem>>, %arg4: memref<1x8x32xf32, #tpu.memory_space<vmem>>, %arg5: memref<32x64xf32, #tpu.memory_space<vmem>>, %arg6: memref<1x64xf32, #tpu.memory_space<vmem>>, %arg7: memref<32x64xf32, #tpu.memory_space<vmem>>, %arg8: memref<1x64xf32, #tpu.memory_space<vmem>>, %arg9: memref<32x64xf32, #tpu.memory_space<vmem>>, %arg10: memref<1x64xf32, #tpu.memory_space<vmem>>, %arg11: memref<64x32xf32, #tpu.memory_space<vmem>>, %arg12: memref<1x32xf32, #tpu.memory_space<vmem>>, %arg13: memref<1x8x32xf32, #tpu.memory_space<vmem>>, %arg14: memref<1x4x8x8xf32, #tpu.memory_space<vmem>>, %arg15: memref<8x64xf32, #tpu.memory_space<vmem>>, %arg16: memref<8x64xf32, #tpu.memory_space<vmem>>, %arg17: memref<8x64xf32, #tpu.memory_space<vmem>>, %arg18: memref<8x64xf32, #tpu.memory_space<vmem>>) attributes {dimension_semantics = [#tpu.dimension_semantics<parallel>, #tpu.dimension_semantics<parallel>], iteration_bounds = array<i64: 2, 1>, scalar_prefetch = 0 : i64, scratch_operands = 4 : i64, tpu.core_type = #tpu.core_type<tc>, window_params = [{transform_indices = @transform_0, window_bounds = array<i64: 1, 8, 32>}, {transform_indices = @transform_1, window_bounds = array<i64: 1, 8, 32>}, {transform_indices = @transform_2, window_bounds = array<i64: 1, 8, 32>}, {pipeline_mode = #tpu.pipeline_mode<synchronous>, transform_indices = @transform_3, window_bounds = array<i64: 32, 64>}, {pipeline_mode = #tpu.pipeline_mode<synchronous>, transform_indices = @transform_4, window_bounds = array<i64: 1, 64>}, {pipeline_mode = #tpu.pipeline_mode<synchronous>, transform_indices = @transform_5, window_bounds = array<i64: 32, 64>}, {pipeline_mode = #tpu.pipeline_mode<synchronous>, transform_indices = @transform_6, window_bounds = array<i64: 1, 64>}, {pipeline_mode = #tpu.pipeline_mode<synchronous>, transform_indices = @transform_7, window_bounds = array<i64: 32, 64>}, {pipeline_mode = #tpu.pipeline_mode<synchronous>, transform_indices = @transform_8, window_bounds = array<i64: 1, 64>}, {pipeline_mode = #tpu.pipeline_mode<synchronous>, transform_indices = @transform_9, window_bounds = array<i64: 64, 32>}, {pipeline_mode = #tpu.pipeline_mode<synchronous>, transform_indices = @transform_10, window_bounds = array<i64: 1, 32>}, {transform_indices = @transform_11, window_bounds = array<i64: 1, 8, 32>}, {transform_indices = @transform_12, window_bounds = array<i64: 1, 4, 8, 8>}]} {
    %c0 = arith.constant 0 : index
    %c0_0 = arith.constant 0 : index
    %c0_1 = arith.constant 0 : index
    %0 = vector.load %arg2[%c0, %c0_0, %c0_1] : memref<1x8x32xf32, #tpu.memory_space<vmem>>, vector<1x8x32xf32>
    %1 = vector.shape_cast %0 : vector<1x8x32xf32> to vector<8x32xf32>
    %c0_2 = arith.constant 0 : index
    %c0_3 = arith.constant 0 : index
    %2 = vector.load %arg5[%c0_2, %c0_3] : memref<32x64xf32, #tpu.memory_space<vmem>>, vector<32x64xf32>
    %cst = arith.constant dense<0.000000e+00> : vector<8x64xf32>
    %3 = tpu.matmul %1, %2, %cst {dimension_numbers = #tpu.dot_dimension_numbers<[1], [0], [0], [1], [0, 0, 1, 1], [], []>} : vector<8x32xf32>, vector<32x64xf32>, vector<8x64xf32> -> vector<8x64xf32>
    %c0_4 = arith.constant 0 : index
    %c0_5 = arith.constant 0 : index
    %4 = vector.load %arg6[%c0_4, %c0_5] : memref<1x64xf32, #tpu.memory_space<vmem>>, vector<1x64xf32>
    %5 = vector.broadcast %4 : vector<1x64xf32> to vector<8x64xf32>
    %6 = arith.addf %3, %5 : vector<8x64xf32>
    %cst_6 = arith.constant 2.500000e-01 : f32
    %7 = vector.broadcast %cst_6 : f32 to vector<8x64xf32>
    %8 = arith.mulf %6, %7 : vector<8x64xf32>
    %c0_7 = arith.constant 0 : index
    %c0_8 = arith.constant 0 : index
    %9 = vector.load %arg15[%c0_7, %c0_8] : memref<8x64xf32, #tpu.memory_space<vmem>>, vector<8x64xf32>
    tpu.vector_store %arg15[%c0_7, %c0_8], %8 {strides = array<i32>} : memref<8x64xf32, #tpu.memory_space<vmem>>, vector<8x64xf32>,
    %c0_9 = arith.constant 0 : index
    %c0_10 = arith.constant 0 : index
    %c0_11 = arith.constant 0 : index
    %10 = vector.load %arg3[%c0_9, %c0_10, %c0_11] : memref<1x8x32xf32, #tpu.memory_space<vmem>>, vector<1x8x32xf32>
    %11 = vector.shape_cast %10 : vector<1x8x32xf32> to vector<8x32xf32>
    %c0_12 = arith.constant 0 : index
    %c0_13 = arith.constant 0 : index
    %12 = vector.load %arg7[%c0_12, %c0_13] : memref<32x64xf32, #tpu.memory_space<vmem>>, vector<32x64xf32>
    %cst_14 = arith.constant dense<0.000000e+00> : vector<8x64xf32>
    %13 = tpu.matmul %11, %12, %cst_14 {dimension_numbers = #tpu.dot_dimension_numbers<[1], [0], [0], [1], [0, 0, 1, 1], [], []>} : vector<8x32xf32>, vector<32x64xf32>, vector<8x64xf32> -> vector<8x64xf32>
    %c0_15 = arith.constant 0 : index
    %c0_16 = arith.constant 0 : index
    %14 = vector.load %arg8[%c0_15, %c0_16] : memref<1x64xf32, #tpu.memory_space<vmem>>, vector<1x64xf32>
    %15 = vector.broadcast %14 : vector<1x64xf32> to vector<8x64xf32>
    %16 = arith.addf %13, %15 : vector<8x64xf32>
    %c0_17 = arith.constant 0 : index
    %c0_18 = arith.constant 0 : index
    %17 = vector.load %arg16[%c0_17, %c0_18] : memref<8x64xf32, #tpu.memory_space<vmem>>, vector<8x64xf32>
    tpu.vector_store %arg16[%c0_17, %c0_18], %16 {strides = array<i32>} : memref<8x64xf32, #tpu.memory_space<vmem>>, vector<8x64xf32>,
    %c0_19 = arith.constant 0 : index
    %c0_20 = arith.constant 0 : index
    %c0_21 = arith.constant 0 : index
    %18 = vector.load %arg4[%c0_19, %c0_20, %c0_21] : memref<1x8x32xf32, #tpu.memory_space<vmem>>, vector<1x8x32xf32>
    %19 = vector.shape_cast %18 : vector<1x8x32xf32> to vector<8x32xf32>
    %c0_22 = arith.constant 0 : index
    %c0_23 = arith.constant 0 : index
    %20 = vector.load %arg9[%c0_22, %c0_23] : memref<32x64xf32, #tpu.memory_space<vmem>>, vector<32x64xf32>
    %cst_24 = arith.constant dense<0.000000e+00> : vector<8x64xf32>
    %21 = tpu.matmul %19, %20, %cst_24 {dimension_numbers = #tpu.dot_dimension_numbers<[1], [0], [0], [1], [0, 0, 1, 1], [], []>} : vector<8x32xf32>, vector<32x64xf32>, vector<8x64xf32> -> vector<8x64xf32>
    %c0_25 = arith.constant 0 : index
    %c0_26 = arith.constant 0 : index
    %22 = vector.load %arg10[%c0_25, %c0_26] : memref<1x64xf32, #tpu.memory_space<vmem>>, vector<1x64xf32>
    %23 = vector.broadcast %22 : vector<1x64xf32> to vector<8x64xf32>
    %24 = arith.addf %21, %23 : vector<8x64xf32>
    %c0_27 = arith.constant 0 : index
    %c0_28 = arith.constant 0 : index
    %25 = vector.load %arg17[%c0_27, %c0_28] : memref<8x64xf32, #tpu.memory_space<vmem>>, vector<8x64xf32>
    tpu.vector_store %arg17[%c0_27, %c0_28], %24 {strides = array<i32>} : memref<8x64xf32, #tpu.memory_space<vmem>>, vector<8x64xf32>,
    %c0_29 = arith.constant 0 : index
    %c0_30 = arith.constant 0 : index
    %26 = vector.load %arg15[%c0_29, %c0_30] : memref<8x64xf32, #tpu.memory_space<vmem>>, vector<8x16xf32>
    %c0_31 = arith.constant 0 : index
    %c0_32 = arith.constant 0 : index
    %27 = vector.load %arg16[%c0_31, %c0_32] : memref<8x64xf32, #tpu.memory_space<vmem>>, vector<8x16xf32>
    %c0_33 = arith.constant 0 : index
    %c0_34 = arith.constant 0 : index
    %28 = vector.load %arg17[%c0_33, %c0_34] : memref<8x64xf32, #tpu.memory_space<vmem>>, vector<8x16xf32>
    %cst_35 = arith.constant dense<0.000000e+00> : vector<8x8xf32>
    %29 = tpu.matmul %26, %27, %cst_35 {dimension_numbers = #tpu.dot_dimension_numbers<[1], [1], [0], [0], [0, 0, 1, 0], [], []>} : vector<8x16xf32>, vector<8x16xf32>, vector<8x8xf32> -> vector<8x8xf32>
    %cst_36 = arith.constant dense<0xFF800000> : vector<8xf32>
    %30 = vector.multi_reduction <maximumf>, %29, %cst_36 [1] : vector<8x8xf32> to vector<8xf32>
    %cst_37 = arith.constant 0xFF800000 : f32
    %31 = vector.broadcast %cst_37 : f32 to vector<8xf32>
    %32 = arith.maximumf %31, %30 : vector<8xf32>
    %33 = vector.shape_cast %32 : vector<8xf32> to vector<8x1xf32>
    %34 = vector.broadcast %33 : vector<8x1xf32> to vector<8x8xf32>
    %35 = arith.subf %29, %34 : vector<8x8xf32>
    %36 = math.exp %35 : vector<8x8xf32>
    %cst_38 = arith.constant dense<0.000000e+00> : vector<8xf32>
    %37 = vector.multi_reduction <add>, %36, %cst_38 [1] : vector<8x8xf32> to vector<8xf32>
    %38 = vector.shape_cast %37 : vector<8xf32> to vector<8x1xf32>
    %39 = vector.broadcast %38 : vector<8x1xf32> to vector<8x8xf32>
    %40 = arith.divf %36, %39 : vector<8x8xf32>
    %c0_39 = arith.constant 0 : index
    %c0_40 = arith.constant 0 : index
    %c0_41 = arith.constant 0 : index
    %c0_42 = arith.constant 0 : index
    %41 = vector.load %arg14[%c0_39, %c0_40, %c0_41, %c0_42] : memref<1x4x8x8xf32, #tpu.memory_space<vmem>>, vector<1x1x8x8xf32>
    %42 = vector.shape_cast %41 : vector<1x1x8x8xf32> to vector<8x8xf32>
    %43 = vector.shape_cast %40 : vector<8x8xf32> to vector<1x1x8x8xf32>
    tpu.vector_store %arg14[%c0_39, %c0_40, %c0_41, %c0_42], %43 {strides = array<i32>} : memref<1x4x8x8xf32, #tpu.memory_space<vmem>>, vector<1x1x8x8xf32>,
    %cst_43 = arith.constant dense<0.000000e+00> : vector<8x16xf32>
    %44 = tpu.matmul %40, %28, %cst_43 {dimension_numbers = #tpu.dot_dimension_numbers<[1], [0], [0], [1], [0, 0, 1, 1], [], []>} : vector<8x8xf32>, vector<8x16xf32>, vector<8x16xf32> -> vector<8x16xf32>
    %c0_44 = arith.constant 0 : index
    %c0_45 = arith.constant 0 : index
    %45 = vector.load %arg18[%c0_44, %c0_45] : memref<8x64xf32, #tpu.memory_space<vmem>>, vector<8x16xf32>
    tpu.vector_store %arg18[%c0_44, %c0_45], %44 {strides = array<i32>} : memref<8x64xf32, #tpu.memory_space<vmem>>, vector<8x16xf32>,
    %c0_46 = arith.constant 0 : index
    %c16 = arith.constant 16 : index
    %46 = vector.load %arg15[%c0_46, %c16] : memref<8x64xf32, #tpu.memory_space<vmem>>, vector<8x16xf32>
    %c0_47 = arith.constant 0 : index
    %c16_48 = arith.constant 16 : index
    %47 = vector.load %arg16[%c0_47, %c16_48] : memref<8x64xf32, #tpu.memory_space<vmem>>, vector<8x16xf32>
    %c0_49 = arith.constant 0 : index
    %c16_50 = arith.constant 16 : index
    %48 = vector.load %arg17[%c0_49, %c16_50] : memref<8x64xf32, #tpu.memory_space<vmem>>, vector<8x16xf32>
    %cst_51 = arith.constant dense<0.000000e+00> : vector<8x8xf32>
    %49 = tpu.matmul %46, %47, %cst_51 {dimension_numbers = #tpu.dot_dimension_numbers<[1], [1], [0], [0], [0, 0, 1, 0], [], []>} : vector<8x16xf32>, vector<8x16xf32>, vector<8x8xf32> -> vector<8x8xf32>
    %cst_52 = arith.constant dense<0xFF800000> : vector<8xf32>
    %50 = vector.multi_reduction <maximumf>, %49, %cst_52 [1] : vector<8x8xf32> to vector<8xf32>
    %cst_53 = arith.constant 0xFF800000 : f32
    %51 = vector.broadcast %cst_53 : f32 to vector<8xf32>
    %52 = arith.maximumf %51, %50 : vector<8xf32>
    %53 = vector.shape_cast %52 : vector<8xf32> to vector<8x1xf32>
    %54 = vector.broadcast %53 : vector<8x1xf32> to vector<8x8xf32>
    %55 = arith.subf %49, %54 : vector<8x8xf32>
    %56 = math.exp %55 : vector<8x8xf32>
    %cst_54 = arith.constant dense<0.000000e+00> : vector<8xf32>
    %57 = vector.multi_reduction <add>, %56, %cst_54 [1] : vector<8x8xf32> to vector<8xf32>
    %58 = vector.shape_cast %57 : vector<8xf32> to vector<8x1xf32>
    %59 = vector.broadcast %58 : vector<8x1xf32> to vector<8x8xf32>
    %60 = arith.divf %56, %59 : vector<8x8xf32>
    %c0_55 = arith.constant 0 : index
    %c1 = arith.constant 1 : index
    %c0_56 = arith.constant 0 : index
    %c0_57 = arith.constant 0 : index
    %61 = vector.load %arg14[%c0_55, %c1, %c0_56, %c0_57] : memref<1x4x8x8xf32, #tpu.memory_space<vmem>>, vector<1x1x8x8xf32>
    %62 = vector.shape_cast %61 : vector<1x1x8x8xf32> to vector<8x8xf32>
    %63 = vector.shape_cast %60 : vector<8x8xf32> to vector<1x1x8x8xf32>
    tpu.vector_store %arg14[%c0_55, %c1, %c0_56, %c0_57], %63 {strides = array<i32>} : memref<1x4x8x8xf32, #tpu.memory_space<vmem>>, vector<1x1x8x8xf32>,
    %cst_58 = arith.constant dense<0.000000e+00> : vector<8x16xf32>
    %64 = tpu.matmul %60, %48, %cst_58 {dimension_numbers = #tpu.dot_dimension_numbers<[1], [0], [0], [1], [0, 0, 1, 1], [], []>} : vector<8x8xf32>, vector<8x16xf32>, vector<8x16xf32> -> vector<8x16xf32>
    %c0_59 = arith.constant 0 : index
    %c16_60 = arith.constant 16 : index
    %65 = vector.load %arg18[%c0_59, %c16_60] : memref<8x64xf32, #tpu.memory_space<vmem>>, vector<8x16xf32>
    tpu.vector_store %arg18[%c0_59, %c16_60], %64 {strides = array<i32>} : memref<8x64xf32, #tpu.memory_space<vmem>>, vector<8x16xf32>,
    %c0_61 = arith.constant 0 : index
    %c32 = arith.constant 32 : index
    %66 = vector.load %arg15[%c0_61, %c32] : memref<8x64xf32, #tpu.memory_space<vmem>>, vector<8x16xf32>
    %c0_62 = arith.constant 0 : index
    %c32_63 = arith.constant 32 : index
    %67 = vector.load %arg16[%c0_62, %c32_63] : memref<8x64xf32, #tpu.memory_space<vmem>>, vector<8x16xf32>
    %c0_64 = arith.constant 0 : index
    %c32_65 = arith.constant 32 : index
    %68 = vector.load %arg17[%c0_64, %c32_65] : memref<8x64xf32, #tpu.memory_space<vmem>>, vector<8x16xf32>
    %cst_66 = arith.constant dense<0.000000e+00> : vector<8x8xf32>
    %69 = tpu.matmul %66, %67, %cst_66 {dimension_numbers = #tpu.dot_dimension_numbers<[1], [1], [0], [0], [0, 0, 1, 0], [], []>} : vector<8x16xf32>, vector<8x16xf32>, vector<8x8xf32> -> vector<8x8xf32>
    %cst_67 = arith.constant dense<0xFF800000> : vector<8xf32>
    %70 = vector.multi_reduction <maximumf>, %69, %cst_67 [1] : vector<8x8xf32> to vector<8xf32>
    %cst_68 = arith.constant 0xFF800000 : f32
    %71 = vector.broadcast %cst_68 : f32 to vector<8xf32>
    %72 = arith.maximumf %71, %70 : vector<8xf32>
    %73 = vector.shape_cast %72 : vector<8xf32> to vector<8x1xf32>
    %74 = vector.broadcast %73 : vector<8x1xf32> to vector<8x8xf32>
    %75 = arith.subf %69, %74 : vector<8x8xf32>
    %76 = math.exp %75 : vector<8x8xf32>
    %cst_69 = arith.constant dense<0.000000e+00> : vector<8xf32>
    %77 = vector.multi_reduction <add>, %76, %cst_69 [1] : vector<8x8xf32> to vector<8xf32>
    %78 = vector.shape_cast %77 : vector<8xf32> to vector<8x1xf32>
    %79 = vector.broadcast %78 : vector<8x1xf32> to vector<8x8xf32>
    %80 = arith.divf %76, %79 : vector<8x8xf32>
    %c0_70 = arith.constant 0 : index
    %c2 = arith.constant 2 : index
    %c0_71 = arith.constant 0 : index
    %c0_72 = arith.constant 0 : index
    %81 = vector.load %arg14[%c0_70, %c2, %c0_71, %c0_72] : memref<1x4x8x8xf32, #tpu.memory_space<vmem>>, vector<1x1x8x8xf32>
    %82 = vector.shape_cast %81 : vector<1x1x8x8xf32> to vector<8x8xf32>
    %83 = vector.shape_cast %80 : vector<8x8xf32> to vector<1x1x8x8xf32>
    tpu.vector_store %arg14[%c0_70, %c2, %c0_71, %c0_72], %83 {strides = array<i32>} : memref<1x4x8x8xf32, #tpu.memory_space<vmem>>, vector<1x1x8x8xf32>,
    %cst_73 = arith.constant dense<0.000000e+00> : vector<8x16xf32>
    %84 = tpu.matmul %80, %68, %cst_73 {dimension_numbers = #tpu.dot_dimension_numbers<[1], [0], [0], [1], [0, 0, 1, 1], [], []>} : vector<8x8xf32>, vector<8x16xf32>, vector<8x16xf32> -> vector<8x16xf32>
    %c0_74 = arith.constant 0 : index
    %c32_75 = arith.constant 32 : index
    %85 = vector.load %arg18[%c0_74, %c32_75] : memref<8x64xf32, #tpu.memory_space<vmem>>, vector<8x16xf32>
    tpu.vector_store %arg18[%c0_74, %c32_75], %84 {strides = array<i32>} : memref<8x64xf32, #tpu.memory_space<vmem>>, vector<8x16xf32>,
    %c0_76 = arith.constant 0 : index
    %c48 = arith.constant 48 : index
    %86 = vector.load %arg15[%c0_76, %c48] : memref<8x64xf32, #tpu.memory_space<vmem>>, vector<8x16xf32>
    %c0_77 = arith.constant 0 : index
    %c48_78 = arith.constant 48 : index
    %87 = vector.load %arg16[%c0_77, %c48_78] : memref<8x64xf32, #tpu.memory_space<vmem>>, vector<8x16xf32>
    %c0_79 = arith.constant 0 : index
    %c48_80 = arith.constant 48 : index
    %88 = vector.load %arg17[%c0_79, %c48_80] : memref<8x64xf32, #tpu.memory_space<vmem>>, vector<8x16xf32>
    %cst_81 = arith.constant dense<0.000000e+00> : vector<8x8xf32>
    %89 = tpu.matmul %86, %87, %cst_81 {dimension_numbers = #tpu.dot_dimension_numbers<[1], [1], [0], [0], [0, 0, 1, 0], [], []>} : vector<8x16xf32>, vector<8x16xf32>, vector<8x8xf32> -> vector<8x8xf32>
    %cst_82 = arith.constant dense<0xFF800000> : vector<8xf32>
    %90 = vector.multi_reduction <maximumf>, %89, %cst_82 [1] : vector<8x8xf32> to vector<8xf32>
    %cst_83 = arith.constant 0xFF800000 : f32
    %91 = vector.broadcast %cst_83 : f32 to vector<8xf32>
    %92 = arith.maximumf %91, %90 : vector<8xf32>
    %93 = vector.shape_cast %92 : vector<8xf32> to vector<8x1xf32>
    %94 = vector.broadcast %93 : vector<8x1xf32> to vector<8x8xf32>
    %95 = arith.subf %89, %94 : vector<8x8xf32>
    %96 = math.exp %95 : vector<8x8xf32>
    %cst_84 = arith.constant dense<0.000000e+00> : vector<8xf32>
    %97 = vector.multi_reduction <add>, %96, %cst_84 [1] : vector<8x8xf32> to vector<8xf32>
    %98 = vector.shape_cast %97 : vector<8xf32> to vector<8x1xf32>
    %99 = vector.broadcast %98 : vector<8x1xf32> to vector<8x8xf32>
    %100 = arith.divf %96, %99 : vector<8x8xf32>
    %c0_85 = arith.constant 0 : index
    %c3 = arith.constant 3 : index
    %c0_86 = arith.constant 0 : index
    %c0_87 = arith.constant 0 : index
    %101 = vector.load %arg14[%c0_85, %c3, %c0_86, %c0_87] : memref<1x4x8x8xf32, #tpu.memory_space<vmem>>, vector<1x1x8x8xf32>
    %102 = vector.shape_cast %101 : vector<1x1x8x8xf32> to vector<8x8xf32>
    %103 = vector.shape_cast %100 : vector<8x8xf32> to vector<1x1x8x8xf32>
    tpu.vector_store %arg14[%c0_85, %c3, %c0_86, %c0_87], %103 {strides = array<i32>} : memref<1x4x8x8xf32, #tpu.memory_space<vmem>>, vector<1x1x8x8xf32>,
    %cst_88 = arith.constant dense<0.000000e+00> : vector<8x16xf32>
    %104 = tpu.matmul %100, %88, %cst_88 {dimension_numbers = #tpu.dot_dimension_numbers<[1], [0], [0], [1], [0, 0, 1, 1], [], []>} : vector<8x8xf32>, vector<8x16xf32>, vector<8x16xf32> -> vector<8x16xf32>
    %c0_89 = arith.constant 0 : index
    %c48_90 = arith.constant 48 : index
    %105 = vector.load %arg18[%c0_89, %c48_90] : memref<8x64xf32, #tpu.memory_space<vmem>>, vector<8x16xf32>
    tpu.vector_store %arg18[%c0_89, %c48_90], %104 {strides = array<i32>} : memref<8x64xf32, #tpu.memory_space<vmem>>, vector<8x16xf32>,
    %c0_91 = arith.constant 0 : index
    %c0_92 = arith.constant 0 : index
    %106 = vector.load %arg18[%c0_91, %c0_92] : memref<8x64xf32, #tpu.memory_space<vmem>>, vector<8x64xf32>
    %c0_93 = arith.constant 0 : index
    %c0_94 = arith.constant 0 : index
    %107 = vector.load %arg11[%c0_93, %c0_94] : memref<64x32xf32, #tpu.memory_space<vmem>>, vector<64x32xf32>
    %cst_95 = arith.constant dense<0.000000e+00> : vector<8x32xf32>
    %108 = tpu.matmul %106, %107, %cst_95 {dimension_numbers = #tpu.dot_dimension_numbers<[1], [0], [0], [1], [0, 0, 1, 1], [], []>} : vector<8x64xf32>, vector<64x32xf32>, vector<8x32xf32> -> vector<8x32xf32>
    %c0_96 = arith.constant 0 : index
    %c0_97 = arith.constant 0 : index
    %109 = vector.load %arg12[%c0_96, %c0_97] : memref<1x32xf32, #tpu.memory_space<vmem>>, vector<1x32xf32>
    %110 = vector.broadcast %109 : vector<1x32xf32> to vector<8x32xf32>
    %111 = arith.addf %108, %110 : vector<8x32xf32>
    %c0_98 = arith.constant 0 : index
    %c0_99 = arith.constant 0 : index
    %c0_100 = arith.constant 0 : index
    %112 = vector.load %arg13[%c0_98, %c0_99, %c0_100] : memref<1x8x32xf32, #tpu.memory_space<vmem>>, vector<1x8x32xf32>
    %113 = vector.shape_cast %112 : vector<1x8x32xf32> to vector<8x32xf32>
    %114 = vector.shape_cast %111 : vector<8x32xf32> to vector<1x8x32xf32>
    tpu.vector_store %arg13[%c0_98, %c0_99, %c0_100], %114 {strides = array<i32>} : memref<1x8x32xf32, #tpu.memory_space<vmem>>, vector<1x8x32xf32>,
    return
  }
  func.func @transform_0(%arg0: i32, %arg1: i32) -> (i32, i32, i32) {
    %c0_i32 = arith.constant 0 : i32
    %c0_i32_0 = arith.constant 0 : i32
    return %arg0, %arg1, %c0_i32 : i32, i32, i32
  }
  func.func @transform_1(%arg0: i32, %arg1: i32) -> (i32, i32, i32) {
    %c0_i32 = arith.constant 0 : i32
    %c0_i32_0 = arith.constant 0 : i32
    %c0_i32_1 = arith.constant 0 : i32
    return %arg0, %c0_i32, %c0_i32_0 : i32, i32, i32
  }
  func.func @transform_2(%arg0: i32, %arg1: i32) -> (i32, i32, i32) {
    %c0_i32 = arith.constant 0 : i32
    %c0_i32_0 = arith.constant 0 : i32
    %c0_i32_1 = arith.constant 0 : i32
    return %arg0, %c0_i32, %c0_i32_0 : i32, i32, i32
  }
  func.func @transform_3(%arg0: i32, %arg1: i32) -> (i32, i32) {
    %c0_i32 = arith.constant 0 : i32
    %c0_i32_0 = arith.constant 0 : i32
    %c0_i32_1 = arith.constant 0 : i32
    return %c0_i32, %c0_i32_0 : i32, i32
  }
  func.func @transform_4(%arg0: i32, %arg1: i32) -> (i32, i32) {
    %c0_i32 = arith.constant 0 : i32
    %c0_i32_0 = arith.constant 0 : i32
    %c0_i32_1 = arith.constant 0 : i32
    return %c0_i32, %c0_i32_0 : i32, i32
  }
  func.func @transform_5(%arg0: i32, %arg1: i32) -> (i32, i32) {
    %c0_i32 = arith.constant 0 : i32
    %c0_i32_0 = arith.constant 0 : i32
    %c0_i32_1 = arith.constant 0 : i32
    return %c0_i32, %c0_i32_0 : i32, i32
  }
  func.func @transform_6(%arg0: i32, %arg1: i32) -> (i32, i32) {
    %c0_i32 = arith.constant 0 : i32
    %c0_i32_0 = arith.constant 0 : i32
    %c0_i32_1 = arith.constant 0 : i32
    return %c0_i32, %c0_i32_0 : i32, i32
  }
  func.func @transform_7(%arg0: i32, %arg1: i32) -> (i32, i32) {
    %c0_i32 = arith.constant 0 : i32
    %c0_i32_0 = arith.constant 0 : i32
    %c0_i32_1 = arith.constant 0 : i32
    return %c0_i32, %c0_i32_0 : i32, i32
  }
  func.func @transform_8(%arg0: i32, %arg1: i32) -> (i32, i32) {
    %c0_i32 = arith.constant 0 : i32
    %c0_i32_0 = arith.constant 0 : i32
    %c0_i32_1 = arith.constant 0 : i32
    return %c0_i32, %c0_i32_0 : i32, i32
  }
  func.func @transform_9(%arg0: i32, %arg1: i32) -> (i32, i32) {
    %c0_i32 = arith.constant 0 : i32
    %c0_i32_0 = arith.constant 0 : i32
    %c0_i32_1 = arith.constant 0 : i32
    return %c0_i32, %c0_i32_0 : i32, i32
  }
  func.func @transform_10(%arg0: i32, %arg1: i32) -> (i32, i32) {
    %c0_i32 = arith.constant 0 : i32
    %c0_i32_0 = arith.constant 0 : i32
    %c0_i32_1 = arith.constant 0 : i32
    return %c0_i32, %c0_i32_0 : i32, i32
  }
  func.func @transform_11(%arg0: i32, %arg1: i32) -> (i32, i32, i32) {
    %c0_i32 = arith.constant 0 : i32
    %c0_i32_0 = arith.constant 0 : i32
    return %arg0, %arg1, %c0_i32 : i32, i32, i32
  }
  func.func @transform_12(%arg0: i32, %arg1: i32) -> (i32, i32, i32, i32) {
    %c0_i32 = arith.constant 0 : i32
    %c0_i32_0 = arith.constant 0 : i32
    %c0_i32_1 = arith.constant 0 : i32
    return %arg0, %c0_i32, %arg1, %c0_i32_0 : i32, i32, i32, i32
  }
}

</mosaic_0001>

<llo_original>
// kernel: tpu_custom_call.1
$region0: #{tpu_custom_call.1}
  #allocation0 [shape = 'u32[]', space=smem, size = 0x4, offset = 0x4, fixed_abs, tag = 'smem constant byte address 0x4 - core index']
  #allocation1 [shape = 'u32[144,128]{1,0:T(1,128)}', space=vmem, size = 0x12000, scoped, tag = 'internal scratch']
  #allocation2 [shape = 'f32[8,64]{1,0:T(8,128)}', space=vmem, size = 0x1000, scoped, tag = 'scratch operand']
  #allocation3 [shape = 'f32[8,64]{1,0:T(8,128)}', space=vmem, size = 0x1000, scoped, tag = 'scratch operand']
  #allocation4 [shape = 'f32[8,64]{1,0:T(8,128)}', space=vmem, size = 0x1000, scoped, tag = 'scratch operand']
  #allocation5 [shape = 'f32[8,64]{1,0:T(8,128)}', space=vmem, size = 0x1000, scoped, tag = 'scratch operand']
  %s0 = inlined_call_operand.hbm [shape: f32[2,8,32], index: 0, kind: input, shape index: {}]
  %s1 = inlined_call_operand.hbm [shape: f32[2,8,32], index: 1, kind: input, shape index: {}]
  %s2 = inlined_call_operand.hbm [shape: f32[2,8,32], index: 2, kind: input, shape index: {}]
  %s3 = inlined_call_operand.vmem [shape: f32[32,64], index: 3, kind: input, shape index: {}]
  %s4 = inlined_call_operand.vmem [shape: f32[1,64], index: 4, kind: input, shape index: {}]
  %s5 = inlined_call_operand.vmem [shape: f32[32,64], index: 5, kind: input, shape index: {}]
  %s6 = inlined_call_operand.vmem [shape: f32[1,64], index: 6, kind: input, shape index: {}]
  %s7 = inlined_call_operand.vmem [shape: f32[32,64], index: 7, kind: input, shape index: {}]
  %s8 = inlined_call_operand.hbm [shape: f32[1,64], index: 8, kind: input, shape index: {}]
  %s9 = inlined_call_operand.vmem [shape: f32[64,32], index: 9, kind: input, shape index: {}]
  %s10 = inlined_call_operand.vmem [shape: f32[1,32], index: 10, kind: input, shape index: {}]
  %s11 = inlined_call_operand.hbm [shape: f32[2,8,32], index: 11, kind: output, shape index: {0}]
  %s12 = inlined_call_operand.hbm [shape: f32[2,4,8,8], index: 12, kind: output, shape index: {1}]
  %13 = xla_tuple %s11, %s12
  %s14 = sld [smem:[#allocation0]]
  $region101: #{tpu_custom_call.1} parent=0
    _
  %s16 = ssub.s32 1, %s14
  %s17 = scalar_select 0, %s16, %s14
  $region1: #{tpu_custom_call.1} parent=0
    #allocation6 [shape = 'u8[8192]{0}', space=vmem, size = 0x2000, scoped, tag = 'input window, operand 0']
    #allocation7 [shape = 's32[2]{0}', space=sflag, size = 0x8, scoped, tag = 'scoped memory for tpu_custom_call.1']
    #allocation8 [shape = 's32[2]{0}', space=sflag, size = 0x8, scoped, tag = 'scoped memory for tpu_custom_call.1']
    #allocation9 [shape = 'u8[8192]{0}', space=vmem, size = 0x2000, scoped, tag = 'input window, operand 1']
    #allocation10 [shape = 's32[2]{0}', space=sflag, size = 0x8, scoped, tag = 'scoped memory for tpu_custom_call.1']
    #allocation11 [shape = 'u8[8192]{0}', space=vmem, size = 0x2000, scoped, tag = 'input window, operand 2']
    #allocation12 [shape = 'u8[512]{0}', space=vmem, size = 0x400, scoped, tag = 'input window, operand 8, single buffered']
    #allocation13 [shape = 's32[1]{0}', space=sflag, size = 0x4, scoped, tag = 'scoped memory for tpu_custom_call.1']
    #allocation14 [shape = 'u8[8192]{0}', space=vmem, size = 0x2000, scoped, tag = 'output window, operand 0']
    #allocation15 [shape = 'u8[32768]{0}', space=vmem, size = 0x8000, scoped, tag = 'output window, operand 1']
    #allocation16 [shape = 's32[2]{0}', space=sflag, size = 0x8, scoped, tag = 'scoped memory for tpu_custom_call.1']
    %18 = vsyncpa [#allocation7], 0
    %s19 = scalar_lea.sflag [#allocation7], 1
    %20 = vsyncpa %s19, 0
    %21 = vsyncpa [#allocation10], 0
    %s22 = scalar_lea.sflag [#allocation10], 1
    %23 = vsyncpa %s22, 0
    %24 = vsyncpa [#allocation13], 0
    %25 = vsyncpa [#allocation8], 0
    %s26 = scalar_lea.sflag [#allocation8], 1
    %27 = vsyncpa %s26, 0
    %28 = vsyncpa [#allocation16], 0
    %s29 = scalar_lea.sflag [#allocation16], 1
    %30 = vsyncpa %s29, 0
    loop: start=0, step=1, limit=4
    $region2: #{tpu_custom_call.1} parent=1 // loop_pre_header
      _
    $region3: #{tpu_custom_call.1} parent=1 // loop_header
      %s32 = sphi 0, %s36
      %p33 = scmp.ge.s32.totalorder %s32, 4
      %s39 = sphi 0, %s51
      %s40 = sphi 0, %s47
      %s41 = sphi 0, %s39
      %s42 = sphi 0, %s40
      %s43 = sphi 0, %s41
      %s44 = sphi 0, %s42
      %s56 = sphi 0, %s58
      %s59 = sphi 0, %s56
      %s60 = sphi 0, %s59
      %s76 = sphi 0, %s60
      %s82 = sphi 0, %s84
      %s85 = sphi 0, %s82
      %s86 = sphi 0, %s85
      %s102 = sphi 0, %s86
      %s108 = sphi 0, %s110
      %s111 = sphi 0, %s108
      %s112 = sphi 0, %s111
      %s128 = sphi 0, %s112
      %s132 = sphi 0, %s132
      %s134 = sphi 0, %s132
      %s135 = sphi 0, %s134
      %s149 = sphi 0, %s135
      %s153 = sphi 0, %s153
      %s155 = sphi 0, %s153
      %s156 = sphi 0, %s155
      %s170 = sphi 0, %s156
      %s174 = sphi 0, %s174
      %s176 = sphi 0, %s174
      %s177 = sphi 0, %s176
      %s191 = sphi 0, %s177
      %s195 = sphi 0, %s195
      %s197 = sphi 0, %s195
      %s198 = sphi 0, %s197
      %s212 = sphi 0, %s198
      %s216 = sphi 0, %s216
      %s218 = sphi 0, %s216
      %s219 = sphi 0, %s218
      %s233 = sphi 0, %s219
      %s237 = sphi 0, %s237
      %s239 = sphi 0, %s237
      %s240 = sphi 0, %s239
      %s254 = sphi 0, %s240
      %s258 = sphi 0, %s258
      %s260 = sphi 0, %s258
      %s261 = sphi 0, %s260
      %s275 = sphi 0, %s261
      %s279 = sphi 0, %s279
      %s281 = sphi 0, %s279
      %s282 = sphi 0, %s281
      %s296 = sphi 0, %s282
      %s304 = sphi 0, %s306
      %s307 = sphi 0, %s304
      %s308 = sphi 0, %s307
      %s324 = sphi 0, %s308
      %s332 = sphi 0, %s334
      %s335 = sphi 0, %s332
      %s336 = sphi 0, %s335
      %s352 = sphi 0, %s336
    $region4: #{tpu_custom_call.1} parent=1 // loop_header_branch
      %35 = sbr.rel (%p33) target = $region8
    $region5: #{tpu_custom_call.1} parent=1 // loop_body
      %s37 = ssub.s32 %s32, 1
      %s38 = ssub.s32 %s32, 2
      %s45 = sadd.s32 1, %s40
      %p46 = scmp.ge.s32.totalorder %s45, 1
      %s47 = scalar_select %p46, 0, %s45
      %s48 = sadd.s32 1, %s39
      %s49 = scalar_select %p46, %s48, %s39
      %p50 = scmp.ge.s32.totalorder %s49, 2
      %s51 = scalar_select %p50, 0, %s49
      %s52 = ssub.s32 %s39, %s51
      %s53 = ssub.s32 %s40, %s47
      %s54 = sor.u32 %s52, %s53
      %p55 = scmp.eq.s32.totalorder %s54, 0
      %s57 = sadd.s32 %s56, 1
      %s58 = scalar_select %p55, %s56, %s57
      %p61 = pneg %p55
      %p62 = scmp.eq.s32.totalorder %s32, 1
      %p63 = por %p61, %p62
      %p64 = scmp.ne.s32.totalorder %s56, %s59
      %p65 = scmp.eq.s32.totalorder %s32, 0
      %p66 = por %p64, %p65
      %p67 = scmp.ne.s32.totalorder %s56, %s59
      %p68 = scmp.eq.s32.totalorder %s37, 1
      %p69 = por %p67, %p68
      %p70 = scmp.ne.s32.totalorder %s59, %s60
      %p71 = scmp.eq.s32.totalorder %s37, 0
      %p72 = por %p70, %p71
      %p73 = scmp.ne.s32.totalorder %s59, %s60
      %p74 = scmp.eq.s32.totalorder %s38, 1
      %p75 = por %p73, %p74
      %p77 = scmp.ne.s32.totalorder %s60, %s76
      %p78 = scmp.eq.s32.totalorder %s38, 0
      %p79 = por %p77, %p78
      %s80 = ssub.s32 %s39, %s51
      %p81 = scmp.eq.s32.totalorder %s80, 0
      %s83 = sadd.s32 %s82, 1
      %s84 = scalar_select %p81, %s82, %s83
      %p87 = pneg %p81
      %p88 = scmp.eq.s32.totalorder %s32, 1
      %p89 = por %p87, %p88
      %p90 = scmp.ne.s32.totalorder %s82, %s85
      %p91 = scmp.eq.s32.totalorder %s32, 0
      %p92 = por %p90, %p91
      %p93 = scmp.ne.s32.totalorder %s82, %s85
      %p94 = scmp.eq.s32.totalorder %s37, 1
      %p95 = por %p93, %p94
      %p96 = scmp.ne.s32.totalorder %s85, %s86
      %p97 = scmp.eq.s32.totalorder %s37, 0
      %p98 = por %p96, %p97
      %p99 = scmp.ne.s32.totalorder %s85, %s86
      %p100 = scmp.eq.s32.totalorder %s38, 1
      %p101 = por %p99, %p100
      %p103 = scmp.ne.s32.totalorder %s86, %s102
      %p104 = scmp.eq.s32.totalorder %s38, 0
      %p105 = por %p103, %p104
      %s106 = ssub.s32 %s39, %s51
      %p107 = scmp.eq.s32.totalorder %s106, 0
      %s109 = sadd.s32 %s108, 1
      %s110 = scalar_select %p107, %s108, %s109
      %p113 = pneg %p107
      %p114 = scmp.eq.s32.totalorder %s32, 1
      %p115 = por %p113, %p114
      %p116 = scmp.ne.s32.totalorder %s108, %s111
      %p117 = scmp.eq.s32.totalorder %s32, 0
      %p118 = por %p116, %p117
      %p119 = scmp.ne.s32.totalorder %s108, %s111
      %p120 = scmp.eq.s32.totalorder %s37, 1
      %p121 = por %p119, %p120
      %p122 = scmp.ne.s32.totalorder %s111, %s112
      %p123 = scmp.eq.s32.totalorder %s37, 0
      %p124 = por %p122, %p123
      %p125 = scmp.ne.s32.totalorder %s111, %s112
      %p126 = scmp.eq.s32.totalorder %s38, 1
      %p127 = por %p125, %p126
      %p129 = scmp.ne.s32.totalorder %s112, %s128
      %p130 = scmp.eq.s32.totalorder %s38, 0
      %p131 = por %p129, %p130
      %s133 = sadd.s32 %s132, 1
      %p136 = scmp.eq.s32.totalorder %s32, 1
      %p137 = scmp.ne.s32.totalorder %s132, %s134
      %p138 = scmp.eq.s32.totalorder %s32, 0
      %p139 = por %p137, %p138
      %p140 = scmp.ne.s32.totalorder %s132, %s134
      %p141 = scmp.eq.s32.totalorder %s37, 1
      %p142 = por %p140, %p141
      %p143 = scmp.ne.s32.totalorder %s134, %s135
      %p144 = scmp.eq.s32.totalorder %s37, 0
      %p145 = por %p143, %p144
      %p146 = scmp.ne.s32.totalorder %s134, %s135
      %p147 = scmp.eq.s32.totalorder %s38, 1
      %p148 = por %p146, %p147
      %p150 = scmp.ne.s32.totalorder %s135, %s149
      %p151 = scmp.eq.s32.totalorder %s38, 0
      %p152 = por %p150, %p151
      %s154 = sadd.s32 %s153, 1
      %p157 = scmp.eq.s32.totalorder %s32, 1
      %p158 = scmp.ne.s32.totalorder %s153, %s155
      %p159 = scmp.eq.s32.totalorder %s32, 0
      %p160 = por %p158, %p159
      %p161 = scmp.ne.s32.totalorder %s153, %s155
      %p162 = scmp.eq.s32.totalorder %s37, 1
      %p163 = por %p161, %p162
      %p164 = scmp.ne.s32.totalorder %s155, %s156
      %p165 = scmp.eq.s32.totalorder %s37, 0
      %p166 = por %p164, %p165
      %p167 = scmp.ne.s32.totalorder %s155, %s156
      %p168 = scmp.eq.s32.totalorder %s38, 1
      %p169 = por %p167, %p168
      %p171 = scmp.ne.s32.totalorder %s156, %s170
      %p172 = scmp.eq.s32.totalorder %s38, 0
      %p173 = por %p171, %p172
      %s175 = sadd.s32 %s174, 1
      %p178 = scmp.eq.s32.totalorder %s32, 1
      %p179 = scmp.ne.s32.totalorder %s174, %s176
      %p180 = scmp.eq.s32.totalorder %s32, 0
      %p181 = por %p179, %p180
      %p182 = scmp.ne.s32.totalorder %s174, %s176
      %p183 = scmp.eq.s32.totalorder %s37, 1
      %p184 = por %p182, %p183
      %p185 = scmp.ne.s32.totalorder %s176, %s177
      %p186 = scmp.eq.s32.totalorder %s37, 0
      %p187 = por %p185, %p186
      %p188 = scmp.ne.s32.totalorder %s176, %s177
      %p189 = scmp.eq.s32.totalorder %s38, 1
      %p190 = por %p188, %p189
      %p192 = scmp.ne.s32.totalorder %s177, %s191
      %p193 = scmp.eq.s32.totalorder %s38, 0
      %p194 = por %p192, %p193
      %s196 = sadd.s32 %s195, 1
      %p199 = scmp.eq.s32.totalorder %s32, 1
      %p200 = scmp.ne.s32.totalorder %s195, %s197
      %p201 = scmp.eq.s32.totalorder %s32, 0
      %p202 = por %p200, %p201
      %p203 = scmp.ne.s32.totalorder %s195, %s197
      %p204 = scmp.eq.s32.totalorder %s37, 1
      %p205 = por %p203, %p204
      %p206 = scmp.ne.s32.totalorder %s197, %s198
      %p207 = scmp.eq.s32.totalorder %s37, 0
      %p208 = por %p206, %p207
      %p209 = scmp.ne.s32.totalorder %s197, %s198
      %p210 = scmp.eq.s32.totalorder %s38, 1
      %p211 = por %p209, %p210
      %p213 = scmp.ne.s32.totalorder %s198, %s212
      %p214 = scmp.eq.s32.totalorder %s38, 0
      %p215 = por %p213, %p214
      %s217 = sadd.s32 %s216, 1
      %p220 = scmp.eq.s32.totalorder %s32, 1
      %p221 = scmp.ne.s32.totalorder %s216, %s218
      %p222 = scmp.eq.s32.totalorder %s32, 0
      %p223 = por %p221, %p222
      %p224 = scmp.ne.s32.totalorder %s216, %s218
      %p225 = scmp.eq.s32.totalorder %s37, 1
      %p226 = por %p224, %p225
      %p227 = scmp.ne.s32.totalorder %s218, %s219
      %p228 = scmp.eq.s32.totalorder %s37, 0
      %p229 = por %p227, %p228
      %p230 = scmp.ne.s32.totalorder %s218, %s219
      %p231 = scmp.eq.s32.totalorder %s38, 1
      %p232 = por %p230, %p231
      %p234 = scmp.ne.s32.totalorder %s219, %s233
      %p235 = scmp.eq.s32.totalorder %s38, 0
      %p236 = por %p234, %p235
      %s238 = sadd.s32 %s237, 1
      %p241 = scmp.eq.s32.totalorder %s32, 1
      %p242 = scmp.ne.s32.totalorder %s237, %s239
      %p243 = scmp.eq.s32.totalorder %s32, 0
      %p244 = por %p242, %p243
      %p245 = scmp.ne.s32.totalorder %s237, %s239
      %p246 = scmp.eq.s32.totalorder %s37, 1
      %p247 = por %p245, %p246
      %p248 = scmp.ne.s32.totalorder %s239, %s240
      %p249 = scmp.eq.s32.totalorder %s37, 0
      %p250 = por %p248, %p249
      %p251 = scmp.ne.s32.totalorder %s239, %s240
      %p252 = scmp.eq.s32.totalorder %s38, 1
      %p253 = por %p251, %p252
      %p255 = scmp.ne.s32.totalorder %s240, %s254
      %p256 = scmp.eq.s32.totalorder %s38, 0
      %p257 = por %p255, %p256
      %s259 = sadd.s32 %s258, 1
      %p262 = scmp.eq.s32.totalorder %s32, 1
      %p263 = scmp.ne.s32.totalorder %s258, %s260
      %p264 = scmp.eq.s32.totalorder %s32, 0
      %p265 = por %p263, %p264
      %p266 = scmp.ne.s32.totalorder %s258, %s260
      %p267 = scmp.eq.s32.totalorder %s37, 1
      %p268 = por %p266, %p267
      %p269 = scmp.ne.s32.totalorder %s260, %s261
      %p270 = scmp.eq.s32.totalorder %s37, 0
      %p271 = por %p269, %p270
      %p272 = scmp.ne.s32.totalorder %s260, %s261
      %p273 = scmp.eq.s32.totalorder %s38, 1
      %p274 = por %p272, %p273
      %p276 = scmp.ne.s32.totalorder %s261, %s275
      %p277 = scmp.eq.s32.totalorder %s38, 0
      %p278 = por %p276, %p277
      %s280 = sadd.s32 %s279, 1
      %p283 = scmp.eq.s32.totalorder %s32, 1
      %p284 = scmp.ne.s32.totalorder %s279, %s281
      %p285 = scmp.eq.s32.totalorder %s32, 0
      %p286 = por %p284, %p285
      %p287 = scmp.ne.s32.totalorder %s279, %s281
      %p288 = scmp.eq.s32.totalorder %s37, 1
      %p289 = por %p287, %p288
      %p290 = scmp.ne.s32.totalorder %s281, %s282
      %p291 = scmp.eq.s32.totalorder %s37, 0
      %p292 = por %p290, %p291
      %p293 = scmp.ne.s32.totalorder %s281, %s282
      %p294 = scmp.eq.s32.totalorder %s38, 1
      %p295 = por %p293, %p294
      %p297 = scmp.ne.s32.totalorder %s282, %s296
      %p298 = scmp.eq.s32.totalorder %s38, 0
      %p299 = por %p297, %p298
      %s300 = ssub.s32 %s39, %s51
      %s301 = ssub.s32 %s40, %s47
      %s302 = sor.u32 %s300, %s301
      %p303 = scmp.eq.s32.totalorder %s302, 0
      %s305 = sadd.s32 %s304, 1
      %s306 = scalar_select %p303, %s304, %s305
      %p309 = pneg %p303
      %p310 = scmp.eq.s32.totalorder %s32, 1
      %p311 = por %p309, %p310
      %p312 = scmp.ne.s32.totalorder %s304, %s307
      %p313 = scmp.eq.s32.totalorder %s32, 0
      %p314 = por %p312, %p313
      %p315 = scmp.ne.s32.totalorder %s304, %s307
      %p316 = scmp.eq.s32.totalorder %s37, 1
      %p317 = por %p315, %p316
      %p318 = scmp.ne.s32.totalorder %s307, %s308
      %p319 = scmp.eq.s32.totalorder %s37, 0
      %p320 = por %p318, %p319
      %p321 = scmp.ne.s32.totalorder %s307, %s308
      %p322 = scmp.eq.s32.totalorder %s38, 1
      %p323 = por %p321, %p322
      %p325 = scmp.ne.s32.totalorder %s308, %s324
      %p326 = scmp.eq.s32.totalorder %s38, 0
      %p327 = por %p325, %p326
      %s328 = ssub.s32 %s39, %s51
      %s329 = ssub.s32 %s40, %s47
      %s330 = sor.u32 %s328, %s329
      %p331 = scmp.eq.s32.totalorder %s330, 0
      %s333 = sadd.s32 %s332, 1
      %s334 = scalar_select %p331, %s332, %s333
      %p337 = pneg %p331
      %p338 = scmp.eq.s32.totalorder %s32, 1
      %p339 = por %p337, %p338
      %p340 = scmp.ne.s32.totalorder %s332, %s335
      %p341 = scmp.eq.s32.totalorder %s32, 0
      %p342 = por %p340, %p341
      %p343 = scmp.ne.s32.totalorder %s332, %s335
      %p344 = scmp.eq.s32.totalorder %s37, 1
      %p345 = por %p343, %p344
      %p346 = scmp.ne.s32.totalorder %s335, %s336
      %p347 = scmp.eq.s32.totalorder %s37, 0
      %p348 = por %p346, %p347
      %p349 = scmp.ne.s32.totalorder %s335, %s336
      %p350 = scmp.eq.s32.totalorder %s38, 1
      %p351 = por %p349, %p350
      %p353 = scmp.ne.s32.totalorder %s336, %s352
      %p354 = scmp.eq.s32.totalorder %s38, 0
      %p355 = por %p353, %p354
      %p356 = scmp.le.s32.totalorder 1, %s32
      %p357 = scmp.lt.s32.totalorder %s32, 3
      %p358 = pnand %p356, %p357
      %p359 = pneg %p358
      // Predicated region
      $region9: #{tpu_custom_call.1} parent=5 // pred_check
        _
      $region10: #{tpu_custom_call.1} parent=5 // pred_check_branch
        %361 = sbr.rel (%p358) target = $region12
      $region11: #{tpu_custom_call.1} parent=5 // pred_region
        %s362 = ssub.s32 %s32, 1
        // Predicated region
        $region13: #{tpu_custom_call.1} parent=11 // pred_check
          %p363 = pneg %p145
        $region14: #{tpu_custom_call.1} parent=11 // pred_check_branch
          %365 = sbr.rel (%p363) target = $region16
        $region15: #{tpu_custom_call.1} parent=11 // pred_region
          _
        $region16: #{tpu_custom_call.1} parent=11 // pred_fallthru
          _
        // Predicated region
        $region17: #{tpu_custom_call.1} parent=11 // pred_check
          %p366 = pneg %p166
        $region18: #{tpu_custom_call.1} parent=11 // pred_check_branch
          %368 = sbr.rel (%p366) target = $region20
        $region19: #{tpu_custom_call.1} parent=11 // pred_region
          _
        $region20: #{tpu_custom_call.1} parent=11 // pred_fallthru
          _
        // Predicated region
        $region21: #{tpu_custom_call.1} parent=11 // pred_check
          %p369 = pneg %p187
        $region22: #{tpu_custom_call.1} parent=11 // pred_check_branch
          %371 = sbr.rel (%p369) target = $region24
        $region23: #{tpu_custom_call.1} parent=11 // pred_region
          _
        $region24: #{tpu_custom_call.1} parent=11 // pred_fallthru
          _
        // Predicated region
        $region25: #{tpu_custom_call.1} parent=11 // pred_check
          %p372 = pneg %p208
        $region26: #{tpu_custom_call.1} parent=11 // pred_check_branch
          %374 = sbr.rel (%p372) target = $region28
        $region27: #{tpu_custom_call.1} parent=11 // pred_region
          _
        $region28: #{tpu_custom_call.1} parent=11 // pred_fallthru
          _
        // Predicated region
        $region29: #{tpu_custom_call.1} parent=11 // pred_check
          %p375 = pneg %p229
        $region30: #{tpu_custom_call.1} parent=11 // pred_check_branch
          %377 = sbr.rel (%p375) target = $region32
        $region31: #{tpu_custom_call.1} parent=11 // pred_region
          _
        $region32: #{tpu_custom_call.1} parent=11 // pred_fallthru
          _
        // Predicated region
        $region33: #{tpu_custom_call.1} parent=11 // pred_check
          %p378 = pneg %p250
        $region34: #{tpu_custom_call.1} parent=11 // pred_check_branch
          %380 = sbr.rel (%p378) target = $region36
        $region35: #{tpu_custom_call.1} parent=11 // pred_region
          %s382 = ssub.s32 16, 16
          %383 = vsyncadd [#allocation13], %s382
          %s385 = sshll.u32 [#allocation12], 4
          %s386 = int_to_ptr.vmem [resolvable:$true] %s385
          %388 = dma.hbm_to_vmem [thread:$0]  %s8, 16, %s386, [#allocation13]
        $region36: #{tpu_custom_call.1} parent=11 // pred_fallthru
          _
        // Predicated region
        $region37: #{tpu_custom_call.1} parent=11 // pred_check
          %p389 = pneg %p271
        $region38: #{tpu_custom_call.1} parent=11 // pred_check_branch
          %391 = sbr.rel (%p389) target = $region40
        $region39: #{tpu_custom_call.1} parent=11 // pred_region
          _
        $region40: #{tpu_custom_call.1} parent=11 // pred_fallthru
          _
        // Predicated region
        $region41: #{tpu_custom_call.1} parent=11 // pred_check
          %p392 = pneg %p292
        $region42: #{tpu_custom_call.1} parent=11 // pred_check_branch
          %394 = sbr.rel (%p392) target = $region44
        $region43: #{tpu_custom_call.1} parent=11 // pred_region
          _
        $region44: #{tpu_custom_call.1} parent=11 // pred_fallthru
          _
      $region12: #{tpu_custom_call.1} parent=5 // pred_fallthru
        _
      %p395 = scmp.lt.s32.totalorder %s32, 2
      // Predicated region
      $region45: #{tpu_custom_call.1} parent=5 // pred_check
        %p396 = pneg %p395
      $region46: #{tpu_custom_call.1} parent=5 // pred_check_branch
        %398 = sbr.rel (%p396) target = $region48
      $region47: #{tpu_custom_call.1} parent=5 // pred_region
        // Predicated region
        $region49: #{tpu_custom_call.1} parent=47 // pred_check
          %p399 = pneg %p66
        $region50: #{tpu_custom_call.1} parent=47 // pred_check_branch
          %401 = sbr.rel (%p399) target = $region52
        $region51: #{tpu_custom_call.1} parent=47 // pred_region
          %s402 = sand.u32 %s56, 1
          %s403 = scalar_lea.sflag [#allocation7], %s402
          %s404 = sand.u32 %s56, 1
          %s405 = smul.addr %s404, 8
          %s406 = scalar_lea.vmem [#allocation6], %s405
          %s408 = ssub.s32 128, 128
          %409 = vsyncadd %s403, %s408
          %s410 = sadd.s32 %s40, %s39
          %s411 = smul.addr %s410, 128
          %s412 = scalar_lea.hbm %s0, %s411
          %s414 = sshll.u32 %s406, 4
          %s415 = int_to_ptr.vmem [resolvable:$true] %s414
          %417 = dma.hbm_to_vmem [thread:$0]  %s412, 128, %s415, %s403
        $region52: #{tpu_custom_call.1} parent=47 // pred_fallthru
          _
        // Predicated region
        $region53: #{tpu_custom_call.1} parent=47 // pred_check
          %p418 = pneg %p92
        $region54: #{tpu_custom_call.1} parent=47 // pred_check_branch
          %420 = sbr.rel (%p418) target = $region56
        $region55: #{tpu_custom_call.1} parent=47 // pred_region
          %s421 = sand.u32 %s32, 1
          %s422 = scalar_lea.sflag [#allocation10], %s421
          %s423 = sand.u32 %s82, 1
          %s424 = smul.addr %s423, 8
          %s425 = scalar_lea.vmem [#allocation9], %s424
          %s427 = ssub.s32 128, 128
          %428 = vsyncadd %s422, %s427
          %s429 = smul.addr %s39, 128
          %s430 = scalar_lea.hbm %s1, %s429
          %s432 = sshll.u32 %s425, 4
          %s433 = int_to_ptr.vmem [resolvable:$true] %s432
          %435 = dma.hbm_to_vmem [thread:$0]  %s430, 128, %s433, %s422
        $region56: #{tpu_custom_call.1} parent=47 // pred_fallthru
          _
        // Predicated region
        $region57: #{tpu_custom_call.1} parent=47 // pred_check
          %p436 = pneg %p118
        $region58: #{tpu_custom_call.1} parent=47 // pred_check_branch
          %438 = sbr.rel (%p436) target = $region60
        $region59: #{tpu_custom_call.1} parent=47 // pred_region
          %s439 = sand.u32 %s32, 1
          %s440 = scalar_lea.sflag [#allocation10], %s439
          %s441 = sand.u32 %s108, 1
          %s442 = smul.addr %s441, 8
          %s443 = scalar_lea.vmem [#allocation11], %s442
          %s445 = ssub.s32 128, 128
          %446 = vsyncadd %s440, %s445
          %s447 = smul.addr %s39, 128
          %s448 = scalar_lea.hbm %s2, %s447
          %s450 = sshll.u32 %s443, 4
          %s451 = int_to_ptr.vmem [resolvable:$true] %s450
          %453 = dma.hbm_to_vmem [thread:$0]  %s448, 128, %s451, %s440
        $region60: #{tpu_custom_call.1} parent=47 // pred_fallthru
          _
      $region48: #{tpu_custom_call.1} parent=5 // pred_fallthru
        _
      %p454 = scmp.le.s32.totalorder 1, %s32
      %p455 = scmp.lt.s32.totalorder %s32, 3
      %p456 = pnand %p454, %p455
      %p457 = pneg %p456
      // Predicated region
      $region61: #{tpu_custom_call.1} parent=5 // pred_check
        _
      $region62: #{tpu_custom_call.1} parent=5 // pred_check_branch
        %459 = sbr.rel (%p456) target = $region64
      $region63: #{tpu_custom_call.1} parent=5 // pred_region
        %s460 = ssub.s32 %s32, 1
        %s461 = sand.u32 %s59, 1
        %s462 = scalar_lea.sflag [#allocation7], %s461
        %s463 = sand.u32 %s59, 1
        %s464 = smul.addr %s463, 8
        %s465 = scalar_lea.vmem [#allocation6], %s464
        // Predicated region
        $region65: #{tpu_custom_call.1} parent=63 // pred_check
          %p466 = pneg %p72
        $region66: #{tpu_custom_call.1} parent=63 // pred_check_branch
          %468 = sbr.rel (%p466) target = $region68
        $region67: #{tpu_custom_call.1} parent=63 // pred_region
          %469 = dma.done %s462, 128
        $region68: #{tpu_custom_call.1} parent=63 // pred_fallthru
          _
        %s470 = sand.u32 %s37, 1
        %s471 = scalar_lea.sflag [#allocation10], %s470
        %s472 = sand.u32 %s85, 1
        %s473 = smul.addr %s472, 8
        %s474 = scalar_lea.vmem [#allocation9], %s473
        // Predicated region
        $region69: #{tpu_custom_call.1} parent=63 // pred_check
          %p475 = pneg %p98
        $region70: #{tpu_custom_call.1} parent=63 // pred_check_branch
          %477 = sbr.rel (%p475) target = $region72
        $region71: #{tpu_custom_call.1} parent=63 // pred_region
          %478 = dma.done %s471, 128
        $region72: #{tpu_custom_call.1} parent=63 // pred_fallthru
          _
        %s479 = sand.u32 %s37, 1
        %s480 = scalar_lea.sflag [#allocation10], %s479
        %s481 = sand.u32 %s111, 1
        %s482 = smul.addr %s481, 8
        %s483 = scalar_lea.vmem [#allocation11], %s482
        // Predicated region
        $region73: #{tpu_custom_call.1} parent=63 // pred_check
          %p484 = pneg %p124
        $region74: #{tpu_custom_call.1} parent=63 // pred_check_branch
          %486 = sbr.rel (%p484) target = $region76
        $region75: #{tpu_custom_call.1} parent=63 // pred_region
          %487 = dma.done %s480, 128
        $region76: #{tpu_custom_call.1} parent=63 // pred_fallthru
          _
        // Predicated region
        $region77: #{tpu_custom_call.1} parent=63 // pred_check
          %p488 = pneg %p250
        $region78: #{tpu_custom_call.1} parent=63 // pred_check_branch
          %490 = sbr.rel (%p488) target = $region80
        $region79: #{tpu_custom_call.1} parent=63 // pred_region
          %491 = dma.done [#allocation13], 16
        $region80: #{tpu_custom_call.1} parent=63 // pred_fallthru
          _
        %s492 = sand.u32 %s59, 1
        %s493 = scalar_lea.sflag [#allocation7], %s492
        %s494 = sand.u32 %s59, 1
        %s495 = smul.addr %s494, 8
        %s496 = scalar_lea.vmem [#allocation6], %s495
        %p497 = pneg %p72
        %p498 = pneg %p69
        %s499 = sand.u32 %s37, 1
        %s500 = scalar_lea.sflag [#allocation10], %s499
        %s501 = sand.u32 %s85, 1
        %s502 = smul.addr %s501, 8
        %s503 = scalar_lea.vmem [#allocation9], %s502
        %p504 = pneg %p98
        %p505 = pneg %p95
        %s506 = sand.u32 %s37, 1
        %s507 = scalar_lea.sflag [#allocation10], %s506
        %s508 = sand.u32 %s111, 1
        %s509 = smul.addr %s508, 8
        %s510 = scalar_lea.vmem [#allocation11], %s509
        %p511 = pneg %p124
        %p512 = pneg %p121
        %p513 = pneg %p145
        %p514 = pneg %p142
        %p515 = pneg %p166
        %p516 = pneg %p163
        %p517 = pneg %p187
        %p518 = pneg %p184
        %p519 = pneg %p208
        %p520 = pneg %p205
        %p521 = pneg %p229
        %p522 = pneg %p226
        %p523 = pneg %p250
        %p524 = pneg %p247
        %p525 = pneg %p271
        %p526 = pneg %p268
        %p527 = pneg %p292
        %p528 = pneg %p289
        %p529 = pneg %p320
        %p530 = pneg %p317
        %s531 = sand.u32 %s307, 1
        %s532 = scalar_lea.sflag [#allocation8], %s531
        %s533 = sand.u32 %s307, 1
        %s534 = smul.addr %s533, 8
        %s535 = scalar_lea.vmem [#allocation14], %s534
        %p536 = pneg %p348
        %p537 = pneg %p345
        %s538 = sand.u32 %s335, 1
        %s539 = scalar_lea.sflag [#allocation16], %s538
        %s540 = sand.u32 %s335, 1
        %s541 = smul.addr %s540, 32
        %s542 = scalar_lea.vmem [#allocation15], %s541
        %v543 = vld [vmem:[%s465] sm:$0xff]
        %v544 = vld [vmem:[%s3] sm:$0xff]
        %v545 = vld [vmem:[%s3 + $0x8] sm:$0xff]
        %v546 = vld [vmem:[%s3 + $0x10] sm:$0xff]
        %v547 = vld [vmem:[%s3 + $0x18] sm:$0xff]
        %v548 = vld [vmem:[%s4] sm:$0x1]
        %v550 = vlaneseq
        %v551 = vshrl.u32 %v550, 7
        %v552 = vsub.s32 0, %v551
        %v553 = vrot.slane %v548, %v552
        %vm555 = vcmask 261120
        %v557 = vsel %vm555, %v543, 0
        %559 = vmatprep.subr.mxu0 0.0
        %560 = vmatpush1.msra.mxu0 %v544
        %561 = vmatprep.subr.mxu0 0.0
        %562 = vmatpush1.msra.mxu0 %v545
        %563 = vmatprep.subr.mxu0 0.0
        %564 = vmatpush1.msra.mxu0 %v546
        %565 = vmatprep.subr.mxu0 0.0
        %566 = vmatpush1.msra.mxu0 %v547
        %567 = vmatprep.subr.mxu0 0.0
        %568 = vmatpush1.msra.mxu0 0.0
        %569 = vmatprep.subr.mxu0 0.0
        %570 = vmatpush1.msra.mxu0 0.0
        %571 = vmatprep.subr.mxu0 0.0
        %572 = vmatpush1.msra.mxu0 0.0
        %573 = vmatprep.subr.mxu0 0.0
        %574 = vmatpush1.msra.mxu0 0.0
        %575 = vmatprep.subr.mxu0 0.0
        %576 = vmatpush1.msra.mxu0 0.0
        %577 = vmatprep.subr.mxu0 0.0
        %578 = vmatpush1.msra.mxu0 0.0
        %579 = vmatprep.subr.mxu0 0.0
        %580 = vmatpush1.msra.mxu0 0.0
        %581 = vmatprep.subr.mxu0 0.0
        %582 = vmatpush1.msra.mxu0 0.0
        %583 = vmatprep.subr.mxu0 0.0
        %584 = vmatpush1.msra.mxu0 0.0
        %585 = vmatprep.subr.mxu0 0.0
        %586 = vmatpush1.msra.mxu0 0.0
        %587 = vmatprep.subr.mxu0 0.0
        %588 = vmatpush1.msra.mxu0 0.0
        %589 = vmatprep.subr.mxu0 0.0
        %590 = vmatpush1.msra.mxu0 0.0
        %591 = vmatprep.subr.mxu0 0.0
        %592 = vmatpush1.msra.mxu0 0.0
        %593 = vmatprep.subr.mxu0 0.0
        %594 = vmatpush1.msra.mxu0 0.0
        %595 = vmatprep.subr.mxu0 0.0
        %596 = vmatpush1.msra.mxu0 0.0
        %597 = vmatprep.subr.mxu0 0.0
        %598 = vmatpush1.msra.mxu0 0.0
        %599 = vmatprep.subr.mxu0 0.0
        %600 = vmatpush1.msra.mxu0 0.0
        %601 = vmatprep.subr.mxu0 0.0
        %602 = vmatpush1.msra.mxu0 0.0
        %603 = vmatprep.subr.mxu0 0.0
        %604 = vmatpush1.msra.mxu0 0.0
        %605 = vmatprep.subr.mxu0 0.0
        %606 = vmatpush1.msra.mxu0 0.0
        %607 = vmatprep.subr.mxu0 0.0
        %608 = vmatpush1.msra.mxu0 0.0
        %609 = vmatprep.subr.mxu0 0.0
        %610 = vmatpush1.msra.mxu0 0.0
        %611 = vmatprep.subr.mxu0 0.0
        %612 = vmatpush1.msra.mxu0 0.0
        %613 = vmatprep.subr.mxu0 0.0
        %614 = vmatpush1.msra.mxu0 0.0
        %615 = vmatprep.subr.mxu0 0.0
        %616 = vmatpush1.msra.mxu0 0.0
        %617 = vmatprep.subr.mxu0 0.0
        %618 = vmatpush1.msra.mxu0 0.0
        %619 = vmatprep.subr.mxu0 0.0
        %620 = vmatpush1.msra.mxu0 0.0
        %621 = vmatprep.subr.mxu0 0.0
        %622 = vmatpush1.msra.mxu0 0.0
        %623 = vmatprep.mubr.f32.mxu0 0.0
        %624 = vmatmul.mubr.f32.gmra.mrb[0].mxu0 %v557
        %v625 = vpop.f32.mrb[0].mxu0
        %v626 = vadd.f32 %v553, %v625
        %v627 = vpop.f32.mrb[0].mxu0
        %628 = vdwg.mxu0
        %v629 = vmul.f32 %v626, 0.25
        %vm630 = vcmask 523264
        %631 = vst.msk [vmem:[#allocation2] sm:$0xff] %vm630, %v629
        %v632 = vld [vmem:[%s474] sm:$0xff]
        %v633 = vld [vmem:[%s5] sm:$0xff]
        %v634 = vld [vmem:[%s5 + $0x8] sm:$0xff]
        %v635 = vld [vmem:[%s5 + $0x10] sm:$0xff]
        %v636 = vld [vmem:[%s5 + $0x18] sm:$0xff]
        %v637 = vld [vmem:[%s6] sm:$0x1]
        %v639 = vlaneseq
        %v640 = vshrl.u32 %v639, 7
        %v641 = vsub.s32 0, %v640
        %v642 = vrot.slane %v637, %v641
        %v645 = vsel %vm555, %v632, 0
        %647 = vmatprep.subr.mxu0 0.0
        %648 = vmatpush1.msra.mxu0 %v633
        %649 = vmatprep.subr.mxu0 0.0
        %650 = vmatpush1.msra.mxu0 %v634
        %651 = vmatprep.subr.mxu0 0.0
        %652 = vmatpush1.msra.mxu0 %v635
        %653 = vmatprep.subr.mxu0 0.0
        %654 = vmatpush1.msra.mxu0 %v636
        %655 = vmatprep.subr.mxu0 0.0
        %656 = vmatpush1.msra.mxu0 0.0
        %657 = vmatprep.subr.mxu0 0.0
        %658 = vmatpush1.msra.mxu0 0.0
        %659 = vmatprep.subr.mxu0 0.0
        %660 = vmatpush1.msra.mxu0 0.0
        %661 = vmatprep.subr.mxu0 0.0
        %662 = vmatpush1.msra.mxu0 0.0
        %663 = vmatprep.subr.mxu0 0.0
        %664 = vmatpush1.msra.mxu0 0.0
        %665 = vmatprep.subr.mxu0 0.0
        %666 = vmatpush1.msra.mxu0 0.0
        %667 = vmatprep.subr.mxu0 0.0
        %668 = vmatpush1.msra.mxu0 0.0
        %669 = vmatprep.subr.mxu0 0.0
        %670 = vmatpush1.msra.mxu0 0.0
        %671 = vmatprep.subr.mxu0 0.0
        %672 = vmatpush1.msra.mxu0 0.0
        %673 = vmatprep.subr.mxu0 0.0
        %674 = vmatpush1.msra.mxu0 0.0
        %675 = vmatprep.subr.mxu0 0.0
        %676 = vmatpush1.msra.mxu0 0.0
        %677 = vmatprep.subr.mxu0 0.0
        %678 = vmatpush1.msra.mxu0 0.0
        %679 = vmatprep.subr.mxu0 0.0
        %680 = vmatpush1.msra.mxu0 0.0
        %681 = vmatprep.subr.mxu0 0.0
        %682 = vmatpush1.msra.mxu0 0.0
        %683 = vmatprep.subr.mxu0 0.0
        %684 = vmatpush1.msra.mxu0 0.0
        %685 = vmatprep.subr.mxu0 0.0
        %686 = vmatpush1.msra.mxu0 0.0
        %687 = vmatprep.subr.mxu0 0.0
        %688 = vmatpush1.msra.mxu0 0.0
        %689 = vmatprep.subr.mxu0 0.0
        %690 = vmatpush1.msra.mxu0 0.0
        %691 = vmatprep.subr.mxu0 0.0
        %692 = vmatpush1.msra.mxu0 0.0
        %693 = vmatprep.subr.mxu0 0.0
        %694 = vmatpush1.msra.mxu0 0.0
        %695 = vmatprep.subr.mxu0 0.0
        %696 = vmatpush1.msra.mxu0 0.0
        %697 = vmatprep.subr.mxu0 0.0
        %698 = vmatpush1.msra.mxu0 0.0
        %699 = vmatprep.subr.mxu0 0.0
        %700 = vmatpush1.msra.mxu0 0.0
        %701 = vmatprep.subr.mxu0 0.0
        %702 = vmatpush1.msra.mxu0 0.0
        %703 = vmatprep.subr.mxu0 0.0
        %704 = vmatpush1.msra.mxu0 0.0
        %705 = vmatprep.subr.mxu0 0.0
        %706 = vmatpush1.msra.mxu0 0.0
        %707 = vmatprep.subr.mxu0 0.0
        %708 = vmatpush1.msra.mxu0 0.0
        %709 = vmatprep.subr.mxu0 0.0
        %710 = vmatpush1.msra.mxu0 0.0
        %711 = vmatprep.mubr.f32.mxu0 0.0
        %712 = vmatmul.mubr.f32.gmra.mrb[0].mxu0 %v645
        %v713 = vpop.f32.mrb[0].mxu0
        %v714 = vadd.f32 %v642, %v713
        %v715 = vpop.f32.mrb[0].mxu0
        %716 = vdwg.mxu0
        %717 = vst.msk [vmem:[#allocation3] sm:$0xff] %vm630, %v714
        %v718 = vld [vmem:[%s483] sm:$0xff]
        %v719 = vld [vmem:[%s7] sm:$0xff]
        %v720 = vld [vmem:[%s7 + $0x8] sm:$0xff]
        %v721 = vld [vmem:[%s7 + $0x10] sm:$0xff]
        %v722 = vld [vmem:[%s7 + $0x18] sm:$0xff]
        %v723 = vld [vmem:[#allocation12] sm:$0x1]
        %v725 = vlaneseq
        %v726 = vshrl.u32 %v725, 7
        %v727 = vsub.s32 0, %v726
        %v728 = vrot.slane %v723, %v727
        %v731 = vsel %vm555, %v718, 0
        %733 = vmatprep.subr.mxu0 0.0
        %734 = vmatpush1.msra.mxu0 %v719
        %735 = vmatprep.subr.mxu0 0.0
        %736 = vmatpush1.msra.mxu0 %v720
        %737 = vmatprep.subr.mxu0 0.0
        %738 = vmatpush1.msra.mxu0 %v721
        %739 = vmatprep.subr.mxu0 0.0
        %740 = vmatpush1.msra.mxu0 %v722
        %741 = vmatprep.subr.mxu0 0.0
        %742 = vmatpush1.msra.mxu0 0.0
        %743 = vmatprep.subr.mxu0 0.0
        %744 = vmatpush1.msra.mxu0 0.0
        %745 = vmatprep.subr.mxu0 0.0
        %746 = vmatpush1.msra.mxu0 0.0
        %747 = vmatprep.subr.mxu0 0.0
        %748 = vmatpush1.msra.mxu0 0.0
        %749 = vmatprep.subr.mxu0 0.0
        %750 = vmatpush1.msra.mxu0 0.0
        %751 = vmatprep.subr.mxu0 0.0
        %752 = vmatpush1.msra.mxu0 0.0
        %753 = vmatprep.subr.mxu0 0.0
        %754 = vmatpush1.msra.mxu0 0.0
        %755 = vmatprep.subr.mxu0 0.0
        %756 = vmatpush1.msra.mxu0 0.0
        %757 = vmatprep.subr.mxu0 0.0
        %758 = vmatpush1.msra.mxu0 0.0
        %759 = vmatprep.subr.mxu0 0.0
        %760 = vmatpush1.msra.mxu0 0.0
        %761 = vmatprep.subr.mxu0 0.0
        %762 = vmatpush1.msra.mxu0 0.0
        %763 = vmatprep.subr.mxu0 0.0
        %764 = vmatpush1.msra.mxu0 0.0
        %765 = vmatprep.subr.mxu0 0.0
        %766 = vmatpush1.msra.mxu0 0.0
        %767 = vmatprep.subr.mxu0 0.0
        %768 = vmatpush1.msra.mxu0 0.0
        %769 = vmatprep.subr.mxu0 0.0
        %770 = vmatpush1.msra.mxu0 0.0
        %771 = vmatprep.subr.mxu0 0.0
        %772 = vmatpush1.msra.mxu0 0.0
        %773 = vmatprep.subr.mxu0 0.0
        %774 = vmatpush1.msra.mxu0 0.0
        %775 = vmatprep.subr.mxu0 0.0
        %776 = vmatpush1.msra.mxu0 0.0
        %777 = vmatprep.subr.mxu0 0.0
        %778 = vmatpush1.msra.mxu0 0.0
        %779 = vmatprep.subr.mxu0 0.0
        %780 = vmatpush1.msra.mxu0 0.0
        %781 = vmatprep.subr.mxu0 0.0
        %782 = vmatpush1.msra.mxu0 0.0
        %783 = vmatprep.subr.mxu0 0.0
        %784 = vmatpush1.msra.mxu0 0.0
        %785 = vmatprep.subr.mxu0 0.0
        %786 = vmatpush1.msra.mxu0 0.0
        %787 = vmatprep.subr.mxu0 0.0
        %788 = vmatpush1.msra.mxu0 0.0
        %789 = vmatprep.subr.mxu0 0.0
        %790 = vmatpush1.msra.mxu0 0.0
        %791 = vmatprep.subr.mxu0 0.0
        %792 = vmatpush1.msra.mxu0 0.0
        %793 = vmatprep.subr.mxu0 0.0
        %794 = vmatpush1.msra.mxu0 0.0
        %795 = vmatprep.subr.mxu0 0.0
        %796 = vmatpush1.msra.mxu0 0.0
        %797 = vmatprep.mubr.f32.mxu0 0.0
        %798 = vmatmul.mubr.f32.gmra.mrb[0].mxu0 %v731
        %v799 = vpop.f32.mrb[0].mxu0
        %v800 = vadd.f32 %v728, %v799
        %v801 = vpop.f32.mrb[0].mxu0
        %802 = vdwg.mxu0
        %803 = vst.msk [vmem:[#allocation4] sm:$0xff] %vm630, %v800
        %v804 = vld [vmem:[#allocation2] sm:$0xff]
        %v805 = vld [vmem:[#allocation3] sm:$0xff]
        %v806 = vld [vmem:[#allocation4] sm:$0xff]
        %vm807 = vcmask 130048
        %v809 = vsel %vm807, %v804, 0
        %v812 = vsel %vm807, %v805, 0
        %814 = vmatprep.subr.mxu0 0.0
        %815 = vmatpush1.xpose.msra.mxu0 %v812
        %816 = vmatprep.subr.mxu0 0.0
        %817 = vmatpush1.xpose.msra.mxu0 0.0
        %818 = vmatprep.subr.mxu0 0.0
        %819 = vmatpush1.xpose.msra.mxu0 0.0
        %820 = vmatprep.subr.mxu0 0.0
        %821 = vmatpush1.xpose.msra.mxu0 0.0
        %822 = vmatprep.subr.mxu0 0.0
        %823 = vmatpush1.xpose.msra.mxu0 0.0
        %824 = vmatprep.subr.mxu0 0.0
        %825 = vmatpush1.xpose.msra.mxu0 0.0
        %826 = vmatprep.subr.mxu0 0.0
        %827 = vmatpush1.xpose.msra.mxu0 0.0
        %828 = vmatprep.subr.mxu0 0.0
        %829 = vmatpush1.xpose.msra.mxu0 0.0
        %830 = vmatprep.subr.mxu0 0.0
        %831 = vmatpush1.xpose.msra.mxu0 0.0
        %832 = vmatprep.subr.mxu0 0.0
        %833 = vmatpush1.xpose.msra.mxu0 0.0
        %834 = vmatprep.subr.mxu0 0.0
        %835 = vmatpush1.xpose.msra.mxu0 0.0
        %836 = vmatprep.subr.mxu0 0.0
        %837 = vmatpush1.xpose.msra.mxu0 0.0
        %838 = vmatprep.subr.mxu0 0.0
        %839 = vmatpush1.xpose.msra.mxu0 0.0
        %840 = vmatprep.subr.mxu0 0.0
        %841 = vmatpush1.xpose.msra.mxu0 0.0
        %842 = vmatprep.subr.mxu0 0.0
        %843 = vmatpush1.xpose.msra.mxu0 0.0
        %844 = vmatprep.subr.mxu0 0.0
        %845 = vmatpush1.xpose.msra.mxu0 0.0
        %846 = vmatprep.subr.mxu0 0.0
        %847 = vmatpush1.xpose.msra.mxu0 0.0
        %848 = vmatprep.subr.mxu0 0.0
        %849 = vmatpush1.xpose.msra.mxu0 0.0
        %850 = vmatprep.subr.mxu0 0.0
        %851 = vmatpush1.xpose.msra.mxu0 0.0
        %852 = vmatprep.subr.mxu0 0.0
        %853 = vmatpush1.xpose.msra.mxu0 0.0
        %854 = vmatprep.subr.mxu0 0.0
        %855 = vmatpush1.xpose.msra.mxu0 0.0
        %856 = vmatprep.subr.mxu0 0.0
        %857 = vmatpush1.xpose.msra.mxu0 0.0
        %858 = vmatprep.subr.mxu0 0.0
        %859 = vmatpush1.xpose.msra.mxu0 0.0
        %860 = vmatprep.subr.mxu0 0.0
        %861 = vmatpush1.xpose.msra.mxu0 0.0
        %862 = vmatprep.subr.mxu0 0.0
        %863 = vmatpush1.xpose.msra.mxu0 0.0
        %864 = vmatprep.subr.mxu0 0.0
        %865 = vmatpush1.xpose.msra.mxu0 0.0
        %866 = vmatprep.subr.mxu0 0.0
        %867 = vmatpush1.xpose.msra.mxu0 0.0
        %868 = vmatprep.subr.mxu0 0.0
        %869 = vmatpush1.xpose.msra.mxu0 0.0
        %870 = vmatprep.subr.mxu0 0.0
        %871 = vmatpush1.xpose.msra.mxu0 0.0
        %872 = vmatprep.subr.mxu0 0.0
        %873 = vmatpush1.xpose.msra.mxu0 0.0
        %874 = vmatprep.subr.mxu0 0.0
        %875 = vmatpush1.xpose.msra.mxu0 0.0
        %876 = vmatprep.subr.mxu0 0.0
        %877 = vmatpush1.xpose.msra.mxu0 0.0
        %878 = vmatprep.mubr.f32.mxu0 0.0
        %879 = vmatmul.mubr.f32.gmra.mrb[0].mxu0 %v809
        %v880 = vpop.f32.mrb[0].mxu0
        %v881 = vadd.f32 0.0, %v880
        %v882 = vpop.f32.mrb[0].mxu0
        %883 = vdwg.mxu0
        %vm884 = vcmask 64512
        %v885 = vsel %vm884, %v881, -inf
        %886 = vmax.xlane.f32.xlu0 %v885
        %v887 = vpop.xlane.xlu0 %886
        %v888 = vsub.f32 %v881, %v887
        %v889 = vmul.f32 %v888, 1.442695
        %v890 = vpow.pop %v889
        %v891 = vsel %vm884, %v890, 0.0
        %892 = vadd.xlane.f32.xlu0 %v891
        %v893 = vpop.xlane.xlu0 %892
        %v894 = vrcp.pop %v893
        %v895 = vmul.f32 %v890, %v894
        %896 = vst.msk [vmem:[%s542] sm:$0xff] %vm884, %v895
        %v898 = vsel %vm884, %v895, 0
        %900 = vmatprep.subr.mxu0 0.0
        %901 = vmatpush1.msra.mxu0 %v806
        %902 = vmatprep.subr.mxu0 0.0
        %903 = vmatpush1.msra.mxu0 0.0
        %904 = vmatprep.subr.mxu0 0.0
        %905 = vmatpush1.msra.mxu0 0.0
        %906 = vmatprep.subr.mxu0 0.0
        %907 = vmatpush1.msra.mxu0 0.0
        %908 = vmatprep.subr.mxu0 0.0
        %909 = vmatpush1.msra.mxu0 0.0
        %910 = vmatprep.subr.mxu0 0.0
        %911 = vmatpush1.msra.mxu0 0.0
        %912 = vmatprep.subr.mxu0 0.0
        %913 = vmatpush1.msra.mxu0 0.0
        %914 = vmatprep.subr.mxu0 0.0
        %915 = vmatpush1.msra.mxu0 0.0
        %916 = vmatprep.subr.mxu0 0.0
        %917 = vmatpush1.msra.mxu0 0.0
        %918 = vmatprep.subr.mxu0 0.0
        %919 = vmatpush1.msra.mxu0 0.0
        %920 = vmatprep.subr.mxu0 0.0
        %921 = vmatpush1.msra.mxu0 0.0
        %922 = vmatprep.subr.mxu0 0.0
        %923 = vmatpush1.msra.mxu0 0.0
        %924 = vmatprep.subr.mxu0 0.0
        %925 = vmatpush1.msra.mxu0 0.0
        %926 = vmatprep.subr.mxu0 0.0
        %927 = vmatpush1.msra.mxu0 0.0
        %928 = vmatprep.subr.mxu0 0.0
        %929 = vmatpush1.msra.mxu0 0.0
        %930 = vmatprep.subr.mxu0 0.0
        %931 = vmatpush1.msra.mxu0 0.0
        %932 = vmatprep.subr.mxu0 0.0
        %933 = vmatpush1.msra.mxu0 0.0
        %934 = vmatprep.subr.mxu0 0.0
        %935 = vmatpush1.msra.mxu0 0.0
        %936 = vmatprep.subr.mxu0 0.0
        %937 = vmatpush1.msra.mxu0 0.0
        %938 = vmatprep.subr.mxu0 0.0
        %939 = vmatpush1.msra.mxu0 0.0
        %940 = vmatprep.subr.mxu0 0.0
        %941 = vmatpush1.msra.mxu0 0.0
        %942 = vmatprep.subr.mxu0 0.0
        %943 = vmatpush1.msra.mxu0 0.0
        %944 = vmatprep.subr.mxu0 0.0
        %945 = vmatpush1.msra.mxu0 0.0
        %946 = vmatprep.subr.mxu0 0.0
        %947 = vmatpush1.msra.mxu0 0.0
        %948 = vmatprep.subr.mxu0 0.0
        %949 = vmatpush1.msra.mxu0 0.0
        %950 = vmatprep.subr.mxu0 0.0
        %951 = vmatpush1.msra.mxu0 0.0
        %952 = vmatprep.subr.mxu0 0.0
        %953 = vmatpush1.msra.mxu0 0.0
        %954 = vmatprep.subr.mxu0 0.0
        %955 = vmatpush1.msra.mxu0 0.0
        %956 = vmatprep.subr.mxu0 0.0
        %957 = vmatpush1.msra.mxu0 0.0
        %958 = vmatprep.subr.mxu0 0.0
        %959 = vmatpush1.msra.mxu0 0.0
        %960 = vmatprep.subr.mxu0 0.0
        %961 = vmatpush1.msra.mxu0 0.0
        %962 = vmatprep.subr.mxu0 0.0
        %963 = vmatpush1.msra.mxu0 0.0
        %964 = vmatprep.mubr.f32.mxu0 0.0
        %965 = vmatmul.mubr.f32.gmra.mrb[0].mxu0 %v898
        %v966 = vpop.f32.mrb[0].mxu0
        %v967 = vadd.f32 0.0, %v966
        %v968 = vpop.f32.mrb[0].mxu0
        %969 = vdwg.mxu0
        %970 = vst.msk [vmem:[#allocation5] sm:$0xff] %vm807, %v967
        %v971 = vld [vmem:[#allocation2] sm:$0xff]
        %v972 = vld [vmem:[#allocation3] sm:$0xff]
        %v973 = vld [vmem:[#allocation4] sm:$0xff]
        %975 = vrot.lane.b32.xlu0 %v971, 112
        %v976 = vpop.permute.xlu0 %975
        %978 = vrot.lane.b32.xlu0 %v972, 112
        %v979 = vpop.permute.xlu0 %978
        %v980 = vsel %vm807, %v976, 0
        %v982 = vsel %vm807, %v979, 0
        %984 = vmatprep.subr.mxu0 0.0
        %985 = vmatpush1.xpose.msra.mxu0 %v982
        %986 = vmatprep.subr.mxu0 0.0
        %987 = vmatpush1.xpose.msra.mxu0 0.0
        %988 = vmatprep.subr.mxu0 0.0
        %989 = vmatpush1.xpose.msra.mxu0 0.0
        %990 = vmatprep.subr.mxu0 0.0
        %991 = vmatpush1.xpose.msra.mxu0 0.0
        %992 = vmatprep.subr.mxu0 0.0
        %993 = vmatpush1.xpose.msra.mxu0 0.0
        %994 = vmatprep.subr.mxu0 0.0
        %995 = vmatpush1.xpose.msra.mxu0 0.0
        %996 = vmatprep.subr.mxu0 0.0
        %997 = vmatpush1.xpose.msra.mxu0 0.0
        %998 = vmatprep.subr.mxu0 0.0
        %999 = vmatpush1.xpose.msra.mxu0 0.0
        %1000 = vmatprep.subr.mxu0 0.0
        %1001 = vmatpush1.xpose.msra.mxu0 0.0
        %1002 = vmatprep.subr.mxu0 0.0
        %1003 = vmatpush1.xpose.msra.mxu0 0.0
        %1004 = vmatprep.subr.mxu0 0.0
        %1005 = vmatpush1.xpose.msra.mxu0 0.0
        %1006 = vmatprep.subr.mxu0 0.0
        %1007 = vmatpush1.xpose.msra.mxu0 0.0
        %1008 = vmatprep.subr.mxu0 0.0
        %1009 = vmatpush1.xpose.msra.mxu0 0.0
        %1010 = vmatprep.subr.mxu0 0.0
        %1011 = vmatpush1.xpose.msra.mxu0 0.0
        %1012 = vmatprep.subr.mxu0 0.0
        %1013 = vmatpush1.xpose.msra.mxu0 0.0
        %1014 = vmatprep.subr.mxu0 0.0
        %1015 = vmatpush1.xpose.msra.mxu0 0.0
        %1016 = vmatprep.subr.mxu0 0.0
        %1017 = vmatpush1.xpose.msra.mxu0 0.0
        %1018 = vmatprep.subr.mxu0 0.0
        %1019 = vmatpush1.xpose.msra.mxu0 0.0
        %1020 = vmatprep.subr.mxu0 0.0
        %1021 = vmatpush1.xpose.msra.mxu0 0.0
        %1022 = vmatprep.subr.mxu0 0.0
        %1023 = vmatpush1.xpose.msra.mxu0 0.0
        %1024 = vmatprep.subr.mxu0 0.0
        %1025 = vmatpush1.xpose.msra.mxu0 0.0
        %1026 = vmatprep.subr.mxu0 0.0
        %1027 = vmatpush1.xpose.msra.mxu0 0.0
        %1028 = vmatprep.subr.mxu0 0.0
        %1029 = vmatpush1.xpose.msra.mxu0 0.0
        %1030 = vmatprep.subr.mxu0 0.0
        %1031 = vmatpush1.xpose.msra.mxu0 0.0
        %1032 = vmatprep.subr.mxu0 0.0
        %1033 = vmatpush1.xpose.msra.mxu0 0.0
        %1034 = vmatprep.subr.mxu0 0.0
        %1035 = vmatpush1.xpose.msra.mxu0 0.0
        %1036 = vmatprep.subr.mxu0 0.0
        %1037 = vmatpush1.xpose.msra.mxu0 0.0
        %1038 = vmatprep.subr.mxu0 0.0
        %1039 = vmatpush1.xpose.msra.mxu0 0.0
        %1040 = vmatprep.subr.mxu0 0.0
        %1041 = vmatpush1.xpose.msra.mxu0 0.0
        %1042 = vmatprep.subr.mxu0 0.0
        %1043 = vmatpush1.xpose.msra.mxu0 0.0
        %1044 = vmatprep.subr.mxu0 0.0
        %1045 = vmatpush1.xpose.msra.mxu0 0.0
        %1046 = vmatprep.subr.mxu0 0.0
        %1047 = vmatpush1.xpose.msra.mxu0 0.0
        %1048 = vmatprep.mubr.f32.mxu0 0.0
        %1049 = vmatmul.mubr.f32.gmra.mrb[0].mxu0 %v980
        %v1050 = vpop.f32.mrb[0].mxu0
        %v1051 = vadd.f32 0.0, %v1050
        %v1052 = vpop.f32.mrb[0].mxu0
        %1053 = vdwg.mxu0
        %v1054 = vsel %vm884, %v1051, -inf
        %1055 = vmax.xlane.f32.xlu0 %v1054
        %v1056 = vpop.xlane.xlu0 %1055
        %v1057 = vsub.f32 %v1051, %v1056
        %v1058 = vmul.f32 %v1057, 1.442695
        %v1059 = vpow.pop %v1058
        %v1060 = vsel %vm884, %v1059, 0.0
        %1061 = vadd.xlane.f32.xlu0 %v1060
        %v1062 = vpop.xlane.xlu0 %1061
        %v1063 = vrcp.pop %v1062
        %v1064 = vmul.f32 %v1059, %v1063
        %s1065 = scalar_lea.vmem %s542, 8 [#allocation15]
        %1066 = vst.msk [vmem:[%s1065] sm:$0xff] %vm884, %v1064
        %1068 = vrot.lane.b32.xlu0 %v973, 112
        %v1069 = vpop.permute.xlu0 %1068
        %v1072 = vsel %vm884, %v1064, 0
        %1074 = vmatprep.subr.mxu0 0.0
        %1075 = vmatpush1.msra.mxu0 %v1069
        %1076 = vmatprep.subr.mxu0 0.0
        %1077 = vmatpush1.msra.mxu0 0.0
        %1078 = vmatprep.subr.mxu0 0.0
        %1079 = vmatpush1.msra.mxu0 0.0
        %1080 = vmatprep.subr.mxu0 0.0
        %1081 = vmatpush1.msra.mxu0 0.0
        %1082 = vmatprep.subr.mxu0 0.0
        %1083 = vmatpush1.msra.mxu0 0.0
        %1084 = vmatprep.subr.mxu0 0.0
        %1085 = vmatpush1.msra.mxu0 0.0
        %1086 = vmatprep.subr.mxu0 0.0
        %1087 = vmatpush1.msra.mxu0 0.0
        %1088 = vmatprep.subr.mxu0 0.0
        %1089 = vmatpush1.msra.mxu0 0.0
        %1090 = vmatprep.subr.mxu0 0.0
        %1091 = vmatpush1.msra.mxu0 0.0
        %1092 = vmatprep.subr.mxu0 0.0
        %1093 = vmatpush1.msra.mxu0 0.0
        %1094 = vmatprep.subr.mxu0 0.0
        %1095 = vmatpush1.msra.mxu0 0.0
        %1096 = vmatprep.subr.mxu0 0.0
        %1097 = vmatpush1.msra.mxu0 0.0
        %1098 = vmatprep.subr.mxu0 0.0
        %1099 = vmatpush1.msra.mxu0 0.0
        %1100 = vmatprep.subr.mxu0 0.0
        %1101 = vmatpush1.msra.mxu0 0.0
        %1102 = vmatprep.subr.mxu0 0.0
        %1103 = vmatpush1.msra.mxu0 0.0
        %1104 = vmatprep.subr.mxu0 0.0
        %1105 = vmatpush1.msra.mxu0 0.0
        %1106 = vmatprep.subr.mxu0 0.0
        %1107 = vmatpush1.msra.mxu0 0.0
        %1108 = vmatprep.subr.mxu0 0.0
        %1109 = vmatpush1.msra.mxu0 0.0
        %1110 = vmatprep.subr.mxu0 0.0
        %1111 = vmatpush1.msra.mxu0 0.0
        %1112 = vmatprep.subr.mxu0 0.0
        %1113 = vmatpush1.msra.mxu0 0.0
        %1114 = vmatprep.subr.mxu0 0.0
        %1115 = vmatpush1.msra.mxu0 0.0
        %1116 = vmatprep.subr.mxu0 0.0
        %1117 = vmatpush1.msra.mxu0 0.0
        %1118 = vmatprep.subr.mxu0 0.0
        %1119 = vmatpush1.msra.mxu0 0.0
        %1120 = vmatprep.subr.mxu0 0.0
        %1121 = vmatpush1.msra.mxu0 0.0
        %1122 = vmatprep.subr.mxu0 0.0
        %1123 = vmatpush1.msra.mxu0 0.0
        %1124 = vmatprep.subr.mxu0 0.0
        %1125 = vmatpush1.msra.mxu0 0.0
        %1126 = vmatprep.subr.mxu0 0.0
        %1127 = vmatpush1.msra.mxu0 0.0
        %1128 = vmatprep.subr.mxu0 0.0
        %1129 = vmatpush1.msra.mxu0 0.0
        %1130 = vmatprep.subr.mxu0 0.0
        %1131 = vmatpush1.msra.mxu0 0.0
        %1132 = vmatprep.subr.mxu0 0.0
        %1133 = vmatpush1.msra.mxu0 0.0
        %1134 = vmatprep.subr.mxu0 0.0
        %1135 = vmatpush1.msra.mxu0 0.0
        %1136 = vmatprep.subr.mxu0 0.0
        %1137 = vmatpush1.msra.mxu0 0.0
        %1138 = vmatprep.mubr.f32.mxu0 0.0
        %1139 = vmatmul.mubr.f32.gmra.mrb[0].mxu0 %v1072
        %v1140 = vpop.f32.mrb[0].mxu0
        %v1141 = vadd.f32 0.0, %v1140
        %v1142 = vpop.f32.mrb[0].mxu0
        %1143 = vdwg.mxu0
        %1145 = vrot.lane.b32.xlu0 %v1141, 16
        %v1146 = vpop.permute.xlu0 %1145
        %vm1148 = vcmask 261248
        %1149 = vst.msk [vmem:[#allocation5] sm:$0xff] %vm1148, %v1146
        %v1150 = vld [vmem:[#allocation2] sm:$0xff]
        %v1151 = vld [vmem:[#allocation3] sm:$0xff]
        %v1152 = vld [vmem:[#allocation4] sm:$0xff]
        %1154 = vrot.lane.b32.xlu0 %v1150, 96
        %v1155 = vpop.permute.xlu0 %1154
        %1157 = vrot.lane.b32.xlu0 %v1151, 96
        %v1158 = vpop.permute.xlu0 %1157
        %v1159 = vsel %vm807, %v1155, 0
        %v1161 = vsel %vm807, %v1158, 0
        %1163 = vmatprep.subr.mxu0 0.0
        %1164 = vmatpush1.xpose.msra.mxu0 %v1161
        %1165 = vmatprep.subr.mxu0 0.0
        %1166 = vmatpush1.xpose.msra.mxu0 0.0
        %1167 = vmatprep.subr.mxu0 0.0
        %1168 = vmatpush1.xpose.msra.mxu0 0.0
        %1169 = vmatprep.subr.mxu0 0.0
        %1170 = vmatpush1.xpose.msra.mxu0 0.0
        %1171 = vmatprep.subr.mxu0 0.0
        %1172 = vmatpush1.xpose.msra.mxu0 0.0
        %1173 = vmatprep.subr.mxu0 0.0
        %1174 = vmatpush1.xpose.msra.mxu0 0.0
        %1175 = vmatprep.subr.mxu0 0.0
        %1176 = vmatpush1.xpose.msra.mxu0 0.0
        %1177 = vmatprep.subr.mxu0 0.0
        %1178 = vmatpush1.xpose.msra.mxu0 0.0
        %1179 = vmatprep.subr.mxu0 0.0
        %1180 = vmatpush1.xpose.msra.mxu0 0.0
        %1181 = vmatprep.subr.mxu0 0.0
        %1182 = vmatpush1.xpose.msra.mxu0 0.0
        %1183 = vmatprep.subr.mxu0 0.0
        %1184 = vmatpush1.xpose.msra.mxu0 0.0
        %1185 = vmatprep.subr.mxu0 0.0
        %1186 = vmatpush1.xpose.msra.mxu0 0.0
        %1187 = vmatprep.subr.mxu0 0.0
        %1188 = vmatpush1.xpose.msra.mxu0 0.0
        %1189 = vmatprep.subr.mxu0 0.0
        %1190 = vmatpush1.xpose.msra.mxu0 0.0
        %1191 = vmatprep.subr.mxu0 0.0
        %1192 = vmatpush1.xpose.msra.mxu0 0.0
        %1193 = vmatprep.subr.mxu0 0.0
        %1194 = vmatpush1.xpose.msra.mxu0 0.0
        %1195 = vmatprep.subr.mxu0 0.0
        %1196 = vmatpush1.xpose.msra.mxu0 0.0
        %1197 = vmatprep.subr.mxu0 0.0
        %1198 = vmatpush1.xpose.msra.mxu0 0.0
        %1199 = vmatprep.subr.mxu0 0.0
        %1200 = vmatpush1.xpose.msra.mxu0 0.0
        %1201 = vmatprep.subr.mxu0 0.0
        %1202 = vmatpush1.xpose.msra.mxu0 0.0
        %1203 = vmatprep.subr.mxu0 0.0
        %1204 = vmatpush1.xpose.msra.mxu0 0.0
        %1205 = vmatprep.subr.mxu0 0.0
        %1206 = vmatpush1.xpose.msra.mxu0 0.0
        %1207 = vmatprep.subr.mxu0 0.0
        %1208 = vmatpush1.xpose.msra.mxu0 0.0
        %1209 = vmatprep.subr.mxu0 0.0
        %1210 = vmatpush1.xpose.msra.mxu0 0.0
        %1211 = vmatprep.subr.mxu0 0.0
        %1212 = vmatpush1.xpose.msra.mxu0 0.0
        %1213 = vmatprep.subr.mxu0 0.0
        %1214 = vmatpush1.xpose.msra.mxu0 0.0
        %1215 = vmatprep.subr.mxu0 0.0
        %1216 = vmatpush1.xpose.msra.mxu0 0.0
        %1217 = vmatprep.subr.mxu0 0.0
        %1218 = vmatpush1.xpose.msra.mxu0 0.0
        %1219 = vmatprep.subr.mxu0 0.0
        %1220 = vmatpush1.xpose.msra.mxu0 0.0
        %1221 = vmatprep.subr.mxu0 0.0
        %1222 = vmatpush1.xpose.msra.mxu0 0.0
        %1223 = vmatprep.subr.mxu0 0.0
        %1224 = vmatpush1.xpose.msra.mxu0 0.0
        %1225 = vmatprep.subr.mxu0 0.0
        %1226 = vmatpush1.xpose.msra.mxu0 0.0
        %1227 = vmatprep.mubr.f32.mxu0 0.0
        %1228 = vmatmul.mubr.f32.gmra.mrb[0].mxu0 %v1159
        %v1229 = vpop.f32.mrb[0].mxu0
        %v1230 = vadd.f32 0.0, %v1229
        %v1231 = vpop.f32.mrb[0].mxu0
        %1232 = vdwg.mxu0
        %v1233 = vsel %vm884, %v1230, -inf
        %1234 = vmax.xlane.f32.xlu0 %v1233
        %v1235 = vpop.xlane.xlu0 %1234
        %v1236 = vsub.f32 %v1230, %v1235
        %v1237 = vmul.f32 %v1236, 1.442695
        %v1238 = vpow.pop %v1237
        %v1239 = vsel %vm884, %v1238, 0.0
        %1240 = vadd.xlane.f32.xlu0 %v1239
        %v1241 = vpop.xlane.xlu0 %1240
        %v1242 = vrcp.pop %v1241
        %v1243 = vmul.f32 %v1238, %v1242
        %s1244 = scalar_lea.vmem %s542, 16 [#allocation15]
        %1245 = vst.msk [vmem:[%s1244] sm:$0xff] %vm884, %v1243
        %1247 = vrot.lane.b32.xlu0 %v1152, 96
        %v1248 = vpop.permute.xlu0 %1247
        %v1251 = vsel %vm884, %v1243, 0
        %1253 = vmatprep.subr.mxu0 0.0
        %1254 = vmatpush1.msra.mxu0 %v1248
        %1255 = vmatprep.subr.mxu0 0.0
        %1256 = vmatpush1.msra.mxu0 0.0
        %1257 = vmatprep.subr.mxu0 0.0
        %1258 = vmatpush1.msra.mxu0 0.0
        %1259 = vmatprep.subr.mxu0 0.0
        %1260 = vmatpush1.msra.mxu0 0.0
        %1261 = vmatprep.subr.mxu0 0.0
        %1262 = vmatpush1.msra.mxu0 0.0
        %1263 = vmatprep.subr.mxu0 0.0
        %1264 = vmatpush1.msra.mxu0 0.0
        %1265 = vmatprep.subr.mxu0 0.0
        %1266 = vmatpush1.msra.mxu0 0.0
        %1267 = vmatprep.subr.mxu0 0.0
        %1268 = vmatpush1.msra.mxu0 0.0
        %1269 = vmatprep.subr.mxu0 0.0
        %1270 = vmatpush1.msra.mxu0 0.0
        %1271 = vmatprep.subr.mxu0 0.0
        %1272 = vmatpush1.msra.mxu0 0.0
        %1273 = vmatprep.subr.mxu0 0.0
        %1274 = vmatpush1.msra.mxu0 0.0
        %1275 = vmatprep.subr.mxu0 0.0
        %1276 = vmatpush1.msra.mxu0 0.0
        %1277 = vmatprep.subr.mxu0 0.0
        %1278 = vmatpush1.msra.mxu0 0.0
        %1279 = vmatprep.subr.mxu0 0.0
        %1280 = vmatpush1.msra.mxu0 0.0
        %1281 = vmatprep.subr.mxu0 0.0
        %1282 = vmatpush1.msra.mxu0 0.0
        %1283 = vmatprep.subr.mxu0 0.0
        %1284 = vmatpush1.msra.mxu0 0.0
        %1285 = vmatprep.subr.mxu0 0.0
        %1286 = vmatpush1.msra.mxu0 0.0
        %1287 = vmatprep.subr.mxu0 0.0
        %1288 = vmatpush1.msra.mxu0 0.0
        %1289 = vmatprep.subr.mxu0 0.0
        %1290 = vmatpush1.msra.mxu0 0.0
        %1291 = vmatprep.subr.mxu0 0.0
        %1292 = vmatpush1.msra.mxu0 0.0
        %1293 = vmatprep.subr.mxu0 0.0
        %1294 = vmatpush1.msra.mxu0 0.0
        %1295 = vmatprep.subr.mxu0 0.0
        %1296 = vmatpush1.msra.mxu0 0.0
        %1297 = vmatprep.subr.mxu0 0.0
        %1298 = vmatpush1.msra.mxu0 0.0
        %1299 = vmatprep.subr.mxu0 0.0
        %1300 = vmatpush1.msra.mxu0 0.0
        %1301 = vmatprep.subr.mxu0 0.0
        %1302 = vmatpush1.msra.mxu0 0.0
        %1303 = vmatprep.subr.mxu0 0.0
        %1304 = vmatpush1.msra.mxu0 0.0
        %1305 = vmatprep.subr.mxu0 0.0
        %1306 = vmatpush1.msra.mxu0 0.0
        %1307 = vmatprep.subr.mxu0 0.0
        %1308 = vmatpush1.msra.mxu0 0.0
        %1309 = vmatprep.subr.mxu0 0.0
        %1310 = vmatpush1.msra.mxu0 0.0
        %1311 = vmatprep.subr.mxu0 0.0
        %1312 = vmatpush1.msra.mxu0 0.0
        %1313 = vmatprep.subr.mxu0 0.0
        %1314 = vmatpush1.msra.mxu0 0.0
        %1315 = vmatprep.subr.mxu0 0.0
        %1316 = vmatpush1.msra.mxu0 0.0
        %1317 = vmatprep.mubr.f32.mxu0 0.0
        %1318 = vmatmul.mubr.f32.gmra.mrb[0].mxu0 %v1251
        %v1319 = vpop.f32.mrb[0].mxu0
        %v1320 = vadd.f32 0.0, %v1319
        %v1321 = vpop.f32.mrb[0].mxu0
        %1322 = vdwg.mxu0
        %1324 = vrot.lane.b32.xlu0 %v1320, 32
        %v1325 = vpop.permute.xlu0 %1324
        %vm1327 = vcmask 392448
        %1328 = vst.msk [vmem:[#allocation5] sm:$0xff] %vm1327, %v1325
        %v1329 = vld [vmem:[#allocation2] sm:$0xff]
        %v1330 = vld [vmem:[#allocation3] sm:$0xff]
        %v1331 = vld [vmem:[#allocation4] sm:$0xff]
        %1333 = vrot.lane.b32.xlu0 %v1329, 80
        %v1334 = vpop.permute.xlu0 %1333
        %1336 = vrot.lane.b32.xlu0 %v1330, 80
        %v1337 = vpop.permute.xlu0 %1336
        %v1338 = vsel %vm807, %v1334, 0
        %v1340 = vsel %vm807, %v1337, 0
        %1342 = vmatprep.subr.mxu0 0.0
        %1343 = vmatpush1.xpose.msra.mxu0 %v1340
        %1344 = vmatprep.subr.mxu0 0.0
        %1345 = vmatpush1.xpose.msra.mxu0 0.0
        %1346 = vmatprep.subr.mxu0 0.0
        %1347 = vmatpush1.xpose.msra.mxu0 0.0
        %1348 = vmatprep.subr.mxu0 0.0
        %1349 = vmatpush1.xpose.msra.mxu0 0.0
        %1350 = vmatprep.subr.mxu0 0.0
        %1351 = vmatpush1.xpose.msra.mxu0 0.0
        %1352 = vmatprep.subr.mxu0 0.0
        %1353 = vmatpush1.xpose.msra.mxu0 0.0
        %1354 = vmatprep.subr.mxu0 0.0
        %1355 = vmatpush1.xpose.msra.mxu0 0.0
        %1356 = vmatprep.subr.mxu0 0.0
        %1357 = vmatpush1.xpose.msra.mxu0 0.0
        %1358 = vmatprep.subr.mxu0 0.0
        %1359 = vmatpush1.xpose.msra.mxu0 0.0
        %1360 = vmatprep.subr.mxu0 0.0
        %1361 = vmatpush1.xpose.msra.mxu0 0.0
        %1362 = vmatprep.subr.mxu0 0.0
        %1363 = vmatpush1.xpose.msra.mxu0 0.0
        %1364 = vmatprep.subr.mxu0 0.0
        %1365 = vmatpush1.xpose.msra.mxu0 0.0
        %1366 = vmatprep.subr.mxu0 0.0
        %1367 = vmatpush1.xpose.msra.mxu0 0.0
        %1368 = vmatprep.subr.mxu0 0.0
        %1369 = vmatpush1.xpose.msra.mxu0 0.0
        %1370 = vmatprep.subr.mxu0 0.0
        %1371 = vmatpush1.xpose.msra.mxu0 0.0
        %1372 = vmatprep.subr.mxu0 0.0
        %1373 = vmatpush1.xpose.msra.mxu0 0.0
        %1374 = vmatprep.subr.mxu0 0.0
        %1375 = vmatpush1.xpose.msra.mxu0 0.0
        %1376 = vmatprep.subr.mxu0 0.0
        %1377 = vmatpush1.xpose.msra.mxu0 0.0
        %1378 = vmatprep.subr.mxu0 0.0
        %1379 = vmatpush1.xpose.msra.mxu0 0.0
        %1380 = vmatprep.subr.mxu0 0.0
        %1381 = vmatpush1.xpose.msra.mxu0 0.0
        %1382 = vmatprep.subr.mxu0 0.0
        %1383 = vmatpush1.xpose.msra.mxu0 0.0
        %1384 = vmatprep.subr.mxu0 0.0
        %1385 = vmatpush1.xpose.msra.mxu0 0.0
        %1386 = vmatprep.subr.mxu0 0.0
        %1387 = vmatpush1.xpose.msra.mxu0 0.0
        %1388 = vmatprep.subr.mxu0 0.0
        %1389 = vmatpush1.xpose.msra.mxu0 0.0
        %1390 = vmatprep.subr.mxu0 0.0
        %1391 = vmatpush1.xpose.msra.mxu0 0.0
        %1392 = vmatprep.subr.mxu0 0.0
        %1393 = vmatpush1.xpose.msra.mxu0 0.0
        %1394 = vmatprep.subr.mxu0 0.0
        %1395 = vmatpush1.xpose.msra.mxu0 0.0
        %1396 = vmatprep.subr.mxu0 0.0
        %1397 = vmatpush1.xpose.msra.mxu0 0.0
        %1398 = vmatprep.subr.mxu0 0.0
        %1399 = vmatpush1.xpose.msra.mxu0 0.0
        %1400 = vmatprep.subr.mxu0 0.0
        %1401 = vmatpush1.xpose.msra.mxu0 0.0
        %1402 = vmatprep.subr.mxu0 0.0
        %1403 = vmatpush1.xpose.msra.mxu0 0.0
        %1404 = vmatprep.subr.mxu0 0.0
        %1405 = vmatpush1.xpose.msra.mxu0 0.0
        %1406 = vmatprep.mubr.f32.mxu0 0.0
        %1407 = vmatmul.mubr.f32.gmra.mrb[0].mxu0 %v1338
        %v1408 = vpop.f32.mrb[0].mxu0
        %v1409 = vadd.f32 0.0, %v1408
        %v1410 = vpop.f32.mrb[0].mxu0
        %1411 = vdwg.mxu0
        %v1412 = vsel %vm884, %v1409, -inf
        %1413 = vmax.xlane.f32.xlu0 %v1412
        %v1414 = vpop.xlane.xlu0 %1413
        %v1415 = vsub.f32 %v1409, %v1414
        %v1416 = vmul.f32 %v1415, 1.442695
        %v1417 = vpow.pop %v1416
        %v1418 = vsel %vm884, %v1417, 0.0
        %1419 = vadd.xlane.f32.xlu0 %v1418
        %v1420 = vpop.xlane.xlu0 %1419
        %v1421 = vrcp.pop %v1420
        %v1422 = vmul.f32 %v1417, %v1421
        %s1423 = scalar_lea.vmem %s542, 24 [#allocation15]
        %1424 = vst.msk [vmem:[%s1423] sm:$0xff] %vm884, %v1422
        %1426 = vrot.lane.b32.xlu0 %v1331, 80
        %v1427 = vpop.permute.xlu0 %1426
        %v1430 = vsel %vm884, %v1422, 0
        %1432 = vmatprep.subr.mxu0 0.0
        %1433 = vmatpush1.msra.mxu0 %v1427
        %1434 = vmatprep.subr.mxu0 0.0
        %1435 = vmatpush1.msra.mxu0 0.0
        %1436 = vmatprep.subr.mxu0 0.0
        %1437 = vmatpush1.msra.mxu0 0.0
        %1438 = vmatprep.subr.mxu0 0.0
        %1439 = vmatpush1.msra.mxu0 0.0
        %1440 = vmatprep.subr.mxu0 0.0
        %1441 = vmatpush1.msra.mxu0 0.0
        %1442 = vmatprep.subr.mxu0 0.0
        %1443 = vmatpush1.msra.mxu0 0.0
        %1444 = vmatprep.subr.mxu0 0.0
        %1445 = vmatpush1.msra.mxu0 0.0
        %1446 = vmatprep.subr.mxu0 0.0
        %1447 = vmatpush1.msra.mxu0 0.0
        %1448 = vmatprep.subr.mxu0 0.0
        %1449 = vmatpush1.msra.mxu0 0.0
        %1450 = vmatprep.subr.mxu0 0.0
        %1451 = vmatpush1.msra.mxu0 0.0
        %1452 = vmatprep.subr.mxu0 0.0
        %1453 = vmatpush1.msra.mxu0 0.0
        %1454 = vmatprep.subr.mxu0 0.0
        %1455 = vmatpush1.msra.mxu0 0.0
        %1456 = vmatprep.subr.mxu0 0.0
        %1457 = vmatpush1.msra.mxu0 0.0
        %1458 = vmatprep.subr.mxu0 0.0
        %1459 = vmatpush1.msra.mxu0 0.0
        %1460 = vmatprep.subr.mxu0 0.0
        %1461 = vmatpush1.msra.mxu0 0.0
        %1462 = vmatprep.subr.mxu0 0.0
        %1463 = vmatpush1.msra.mxu0 0.0
        %1464 = vmatprep.subr.mxu0 0.0
        %1465 = vmatpush1.msra.mxu0 0.0
        %1466 = vmatprep.subr.mxu0 0.0
        %1467 = vmatpush1.msra.mxu0 0.0
        %1468 = vmatprep.subr.mxu0 0.0
        %1469 = vmatpush1.msra.mxu0 0.0
        %1470 = vmatprep.subr.mxu0 0.0
        %1471 = vmatpush1.msra.mxu0 0.0
        %1472 = vmatprep.subr.mxu0 0.0
        %1473 = vmatpush1.msra.mxu0 0.0
        %1474 = vmatprep.subr.mxu0 0.0
        %1475 = vmatpush1.msra.mxu0 0.0
        %1476 = vmatprep.subr.mxu0 0.0
        %1477 = vmatpush1.msra.mxu0 0.0
        %1478 = vmatprep.subr.mxu0 0.0
        %1479 = vmatpush1.msra.mxu0 0.0
        %1480 = vmatprep.subr.mxu0 0.0
        %1481 = vmatpush1.msra.mxu0 0.0
        %1482 = vmatprep.subr.mxu0 0.0
        %1483 = vmatpush1.msra.mxu0 0.0
        %1484 = vmatprep.subr.mxu0 0.0
        %1485 = vmatpush1.msra.mxu0 0.0
        %1486 = vmatprep.subr.mxu0 0.0
        %1487 = vmatpush1.msra.mxu0 0.0
        %1488 = vmatprep.subr.mxu0 0.0
        %1489 = vmatpush1.msra.mxu0 0.0
        %1490 = vmatprep.subr.mxu0 0.0
        %1491 = vmatpush1.msra.mxu0 0.0
        %1492 = vmatprep.subr.mxu0 0.0
        %1493 = vmatpush1.msra.mxu0 0.0
        %1494 = vmatprep.subr.mxu0 0.0
        %1495 = vmatpush1.msra.mxu0 0.0
        %1496 = vmatprep.mubr.f32.mxu0 0.0
        %1497 = vmatmul.mubr.f32.gmra.mrb[0].mxu0 %v1430
        %v1498 = vpop.f32.mrb[0].mxu0
        %v1499 = vadd.f32 0.0, %v1498
        %v1500 = vpop.f32.mrb[0].mxu0
        %1501 = vdwg.mxu0
        %1503 = vrot.lane.b32.xlu0 %v1499, 48
        %v1504 = vpop.permute.xlu0 %1503
        %vm1506 = vcmask 523648
        %1507 = vst.msk [vmem:[#allocation5] sm:$0xff] %vm1506, %v1504
        %v1508 = vld [vmem:[#allocation5] sm:$0xff]
        %v1509 = vld [vmem:[%s9] sm:$0xff]
        %v1510 = vld [vmem:[%s9 + $0x8] sm:$0xff]
        %v1511 = vld [vmem:[%s9 + $0x10] sm:$0xff]
        %v1512 = vld [vmem:[%s9 + $0x18] sm:$0xff]
        %v1513 = vld [vmem:[%s9 + $0x20] sm:$0xff]
        %v1514 = vld [vmem:[%s9 + $0x28] sm:$0xff]
        %v1515 = vld [vmem:[%s9 + $0x30] sm:$0xff]
        %v1516 = vld [vmem:[%s9 + $0x38] sm:$0xff]
        %v1517 = vld [vmem:[%s10] sm:$0x1]
        %v1519 = vlaneseq
        %v1520 = vshrl.u32 %v1519, 7
        %v1521 = vsub.s32 0, %v1520
        %v1522 = vrot.slane %v1517, %v1521
        %v1525 = vsel %vm630, %v1508, 0
        %1527 = vmatprep.subr.mxu0 0.0
        %1528 = vmatpush1.msra.mxu0 %v1509
        %1529 = vmatprep.subr.mxu0 0.0
        %1530 = vmatpush1.msra.mxu0 %v1510
        %1531 = vmatprep.subr.mxu0 0.0
        %1532 = vmatpush1.msra.mxu0 %v1511
        %1533 = vmatprep.subr.mxu0 0.0
        %1534 = vmatpush1.msra.mxu0 %v1512
        %1535 = vmatprep.subr.mxu0 0.0
        %1536 = vmatpush1.msra.mxu0 %v1513
        %1537 = vmatprep.subr.mxu0 0.0
        %1538 = vmatpush1.msra.mxu0 %v1514
        %1539 = vmatprep.subr.mxu0 0.0
        %1540 = vmatpush1.msra.mxu0 %v1515
        %1541 = vmatprep.subr.mxu0 0.0
        %1542 = vmatpush1.msra.mxu0 %v1516
        %1543 = vmatprep.subr.mxu0 0.0
        %1544 = vmatpush1.msra.mxu0 0.0
        %1545 = vmatprep.subr.mxu0 0.0
        %1546 = vmatpush1.msra.mxu0 0.0
        %1547 = vmatprep.subr.mxu0 0.0
        %1548 = vmatpush1.msra.mxu0 0.0
        %1549 = vmatprep.subr.mxu0 0.0
        %1550 = vmatpush1.msra.mxu0 0.0
        %1551 = vmatprep.subr.mxu0 0.0
        %1552 = vmatpush1.msra.mxu0 0.0
        %1553 = vmatprep.subr.mxu0 0.0
        %1554 = vmatpush1.msra.mxu0 0.0
        %1555 = vmatprep.subr.mxu0 0.0
        %1556 = vmatpush1.msra.mxu0 0.0
        %1557 = vmatprep.subr.mxu0 0.0
        %1558 = vmatpush1.msra.mxu0 0.0
        %1559 = vmatprep.subr.mxu0 0.0
        %1560 = vmatpush1.msra.mxu0 0.0
        %1561 = vmatprep.subr.mxu0 0.0
        %1562 = vmatpush1.msra.mxu0 0.0
        %1563 = vmatprep.subr.mxu0 0.0
        %1564 = vmatpush1.msra.mxu0 0.0
        %1565 = vmatprep.subr.mxu0 0.0
        %1566 = vmatpush1.msra.mxu0 0.0
        %1567 = vmatprep.subr.mxu0 0.0
        %1568 = vmatpush1.msra.mxu0 0.0
        %1569 = vmatprep.subr.mxu0 0.0
        %1570 = vmatpush1.msra.mxu0 0.0
        %1571 = vmatprep.subr.mxu0 0.0
        %1572 = vmatpush1.msra.mxu0 0.0
        %1573 = vmatprep.subr.mxu0 0.0
        %1574 = vmatpush1.msra.mxu0 0.0
        %1575 = vmatprep.subr.mxu0 0.0
        %1576 = vmatpush1.msra.mxu0 0.0
        %1577 = vmatprep.subr.mxu0 0.0
        %1578 = vmatpush1.msra.mxu0 0.0
        %1579 = vmatprep.subr.mxu0 0.0
        %1580 = vmatpush1.msra.mxu0 0.0
        %1581 = vmatprep.subr.mxu0 0.0
        %1582 = vmatpush1.msra.mxu0 0.0
        %1583 = vmatprep.subr.mxu0 0.0
        %1584 = vmatpush1.msra.mxu0 0.0
        %1585 = vmatprep.subr.mxu0 0.0
        %1586 = vmatpush1.msra.mxu0 0.0
        %1587 = vmatprep.subr.mxu0 0.0
        %1588 = vmatpush1.msra.mxu0 0.0
        %1589 = vmatprep.subr.mxu0 0.0
        %1590 = vmatpush1.msra.mxu0 0.0
        %1591 = vmatprep.mubr.f32.mxu0 0.0
        %1592 = vmatmul.mubr.f32.gmra.mrb[0].mxu0 %v1525
        %v1593 = vpop.f32.mrb[0].mxu0
        %v1594 = vadd.f32 %v1522, %v1593
        %v1595 = vpop.f32.mrb[0].mxu0
        %1596 = vdwg.mxu0
        %1597 = vst.msk [vmem:[%s535] sm:$0xff] %vm555, %v1594
        %s1598 = sand.u32 %s307, 1
        %s1599 = scalar_lea.sflag [#allocation8], %s1598
        %s1600 = sand.u32 %s307, 1
        %s1601 = smul.addr %s1600, 8
        %s1602 = scalar_lea.vmem [#allocation14], %s1601
        %s1603 = sand.u32 %s335, 1
        %s1604 = scalar_lea.sflag [#allocation16], %s1603
        %s1605 = sand.u32 %s335, 1
        %s1606 = smul.addr %s1605, 32
        %s1607 = scalar_lea.vmem [#allocation15], %s1606
        // Predicated region
        $region81: #{tpu_custom_call.1} parent=63 // pred_check
          %p1608 = pneg %p317
        $region82: #{tpu_custom_call.1} parent=63 // pred_check_branch
          %1610 = sbr.rel (%p1608) target = $region84
        $region83: #{tpu_custom_call.1} parent=63 // pred_region
          %s1612 = ssub.s32 128, 128
          %1613 = vsyncadd %s1599, %s1612
          %s1614 = sadd.s32 %s42, %s41
          %s1615 = smul.addr %s1614, 128
          %s1616 = scalar_lea.hbm %s11, %s1615
          %s1618 = sshll.u32 %s1602, 4
          %s1619 = int_to_ptr.vmem [resolvable:$true] %s1618
          %1621 = dma.vmem_to_hbm [thread:$0]  %s1619, 128, %s1616, %s1599
        $region84: #{tpu_custom_call.1} parent=63 // pred_fallthru
          _
        // Predicated region
        $region85: #{tpu_custom_call.1} parent=63 // pred_check
          %p1622 = pneg %p345
        $region86: #{tpu_custom_call.1} parent=63 // pred_check_branch
          %1624 = sbr.rel (%p1622) target = $region88
        $region87: #{tpu_custom_call.1} parent=63 // pred_region
          %s1626 = ssub.s32 512, 512
          %1627 = vsyncadd %s1604, %s1626
          %s1628 = smul.addr %s41, 4
          %s1629 = sadd.s32 %s42, %s1628
          %s1630 = smul.addr %s1629, 128
          %s1631 = scalar_lea.hbm %s12, %s1630
          %s1632 = sshll.u32 %s1607, 4
          %s1633 = int_to_ptr.vmem [resolvable:$true] %s1632
          %1638 = dma.vmem_to_hbm [thread:$0]  %s1633, 512, %s1631, %s1604, 128, 128, 8
        $region88: #{tpu_custom_call.1} parent=63 // pred_fallthru
          _
      $region64: #{tpu_custom_call.1} parent=5 // pred_fallthru
        _
      %p1639 = scmp.le.s32.totalorder 2, %s32
      // Predicated region
      $region89: #{tpu_custom_call.1} parent=5 // pred_check
        %p1640 = pneg %p1639
      $region90: #{tpu_custom_call.1} parent=5 // pred_check_branch
        %1642 = sbr.rel (%p1640) target = $region92
      $region91: #{tpu_custom_call.1} parent=5 // pred_region
        %s1643 = ssub.s32 %s32, 2
        // Predicated region
        $region93: #{tpu_custom_call.1} parent=91 // pred_check
          %p1644 = pneg %p323
        $region94: #{tpu_custom_call.1} parent=91 // pred_check_branch
          %1646 = sbr.rel (%p1644) target = $region96
        $region95: #{tpu_custom_call.1} parent=91 // pred_region
          %s1647 = sand.u32 %s308, 1
          %s1648 = scalar_lea.sflag [#allocation8], %s1647
          %s1649 = sand.u32 %s308, 1
          %s1650 = smul.addr %s1649, 8
          %s1651 = scalar_lea.vmem [#allocation14], %s1650
          %1652 = dma.done %s1648, 128
        $region96: #{tpu_custom_call.1} parent=91 // pred_fallthru
          _
        // Predicated region
        $region97: #{tpu_custom_call.1} parent=91 // pred_check
          %p1653 = pneg %p351
        $region98: #{tpu_custom_call.1} parent=91 // pred_check_branch
          %1655 = sbr.rel (%p1653) target = $region100
        $region99: #{tpu_custom_call.1} parent=91 // pred_region
          %s1656 = sand.u32 %s336, 1
          %s1657 = scalar_lea.sflag [#allocation16], %s1656
          %s1658 = sand.u32 %s336, 1
          %s1659 = smul.addr %s1658, 32
          %s1660 = scalar_lea.vmem [#allocation15], %s1659
          %1661 = dma.done %s1657, 512
        $region100: #{tpu_custom_call.1} parent=91 // pred_fallthru
          _
      $region92: #{tpu_custom_call.1} parent=5 // pred_fallthru
        _
    $region6: #{tpu_custom_call.1} parent=1 // loop_footer
      %s36 = sadd.s32 1, %s32
    $region7: #{tpu_custom_call.1} parent=1 // loop_footer_branch
      %31 = sbr.rel target = $region3
    $region8: #{tpu_custom_call.1} parent=1 // loop_exit
      _
    %1662 = vsyncpa [#allocation7], 1
    %s1663 = scalar_lea.sflag [#allocation7], 1
    %1664 = vsyncpa %s1663, 1
    %1665 = vsyncpa [#allocation10], 1
    %s1666 = scalar_lea.sflag [#allocation10], 1
    %1667 = vsyncpa %s1666, 1
    %1668 = vsyncpa [#allocation13], 1
    %1669 = vsyncpa [#allocation8], 1
    %s1670 = scalar_lea.sflag [#allocation8], 1
    %1671 = vsyncpa %s1670, 1
    %1672 = vsyncpa [#allocation16], 1
    %s1673 = scalar_lea.sflag [#allocation16], 1
    %1674 = vsyncpa %s1673, 1

</llo_original>
